<compile_context>
chip_gen: v7x
topology: tpu7x:2x2x1
jax: 0.10.0
libtpu: 0.0.40
codegen_flags: <defaults>
</compile_context>

<pallas_src>
import functools

import jax
import jax.numpy as jnp
from jax import lax
from jax.experimental import pallas as pl
from jax.experimental.pallas import tpu as pltpu


# ---------------------------------------------------------------------------
# Kernel
# ---------------------------------------------------------------------------
def _mha_flash_kernel(xq_ref, xkv_ref, w_ref, o_ref,
                      q_sc, m_sc, l_sc, acc_sc, *,
                      G, d_kq_p, d_v, scale, compute_dtype):
    """One grid step = (head group g, query tile i, kv tile j).

    Weight slab layout (last axis): [ Q_all | K_all | V_all ] with per-head
    strides d_kq_p / d_kq_p / d_v inside each region.
    """
    j = pl.program_id(2)

    wq = w_ref[:, : G * d_kq_p]          # [d_in, G*d_kq_p]
    wkv = w_ref[:, G * d_kq_p:]          # [d_in, G*d_kq_p + G*d_v]  (K_all|V_all)

    # ---- new query tile: reset the online-softmax state, project q once ----
    @pl.when(j == 0)
    def _():
        m_sc[...] = jnp.full_like(m_sc, -jnp.inf)
        l_sc[...] = jnp.zeros_like(l_sc)
        acc_sc[...] = jnp.zeros_like(acc_sc)
        xq = xq_ref[...].astype(compute_dtype)            # in-kernel cast
        # Scale folded into q: tq*d_kq multiplies instead of tq*tkv per step.
        q_sc[...] = (jnp.dot(xq, wq, preferred_element_type=jnp.float32)
                     * scale).astype(compute_dtype)

    # ---- fused K|V projection for this kv tile (one wide MXU matmul) -------
    xkv = xkv_ref[...].astype(compute_dtype)              # in-kernel cast
    kv = jnp.dot(xkv, wkv, preferred_element_type=jnp.float32)
    k_all = kv[:, : G * d_kq_p].astype(compute_dtype)     # [tkv, G*d_kq_p]
    v_all = kv[:, G * d_kq_p:].astype(compute_dtype)      # [tkv, G*d_v]

    # ---- online-softmax update, one head at a time (G is small, static) ----
    for h in range(G):
        q = q_sc[:, h * d_kq_p:(h + 1) * d_kq_p]          # 128-aligned when padded
        k = k_all[:, h * d_kq_p:(h + 1) * d_kq_p]
        v = v_all[:, h * d_v:(h + 1) * d_v]

        # Contract the d_kq axes directly -> no k.T relayout on the XLU.
        s = lax.dot_general(q, k, (((1,), (1,)), ((), ())),
                            preferred_element_type=jnp.float32)   # [tq, tkv] f32

        m_prev = m_sc[h]                                   # [tq, 1]
        m_new = jnp.maximum(m_prev, jnp.max(s, axis=-1, keepdims=True))
        alpha = jnp.exp(m_prev - m_new)                    # rescale factor
        e = jnp.exp(s - m_new)                             # unnormalized probs (f32)

        l_sc[h] = alpha * l_sc[h] + jnp.sum(e, axis=-1, keepdims=True)
        m_sc[h] = m_new

        sl = slice(h * d_v, (h + 1) * d_v)
        # Deferred normalization: accumulate e @ v, normalize once at the end.
        acc_sc[:, sl] = alpha * acc_sc[:, sl] + jnp.dot(
            e.astype(compute_dtype), v, preferred_element_type=jnp.float32)

    # ---- last kv tile: normalize and emit one lane-dense output stripe -----
    @pl.when(j == pl.num_programs(2) - 1)
    def _():
        for h in range(G):
            sl = slice(h * d_v, (h + 1) * d_v)
            # Reciprocal runs on the EUP slot; approx => rows sum to ~1 (not bit-exact).
            acc_sc[:, sl] = acc_sc[:, sl] * pl.reciprocal(l_sc[h], approx=True)
        o_ref[...] = acc_sc[...].astype(o_ref.dtype)       # single unmasked store


# ---------------------------------------------------------------------------
# Wrapper helpers
# ---------------------------------------------------------------------------
def _heads_per_step(num_heads, d_v):
    """Smallest head-group size whose output stripe is a multiple of 128 lanes;
    otherwise process all heads in one group (block == full output width)."""
    for g in range(1, num_heads):
        if num_heads % g == 0 and (g * d_v) % 128 == 0:
            return g
    return num_heads


def _pad_dim(d, lane=128):
    """Round a per-head segment width up to a lane multiple when it costs <=2x."""
    if d % lane == 0:
        return d
    p = ((d + lane - 1) // lane) * lane
    return p if p <= 2 * d else d


def _fuse_heads(w, group, d_pad):
    """[H, d_in, d] -> [H//group, d_in, group*d_pad]; heads contiguous on the
    last axis, each zero-padded to d_pad columns (zero cols don't change q.k)."""
    H, d_in, d = w.shape
    if d_pad != d:
        w = jnp.pad(w, ((0, 0), (0, 0), (0, d_pad - d)))
    return w.reshape(H // group, group, d_in, d_pad).transpose(0, 2, 1, 3).reshape(
        H // group, d_in, group * d_pad)


def _pick_tile(S, target):
    """Largest multiple-of-8 divisor of S that is <= target (or S itself)."""
    if S <= target:
        return S
    for t in range(target, 7, -1):
        if S % t == 0 and t % 8 == 0:
            return t
    return S


def _vmem_limit_bytes():
    """Scoped-VMEM budget sized to the chip (headroom on v7x's 64 MiB physical,
    well above the 16/32 MiB defaults on v5e/v6e's 128 MiB)."""
    try:
        cap = int(pltpu.get_tpu_info().vmem_capacity_bytes)
    except Exception:
        cap = 64 * 1024 * 1024
    return min((cap * 3) // 4, 100 * 1024 * 1024)


# ---------------------------------------------------------------------------
# Public entry point
# ---------------------------------------------------------------------------
def multi_head_attention(x, wq, wk, wv, *, compute_dtype=jnp.bfloat16,
                         tq_target=256, tkv_target=256):
    """x: [S, d_in]; wq/wk: [H, d_in, d_kq]; wv: [H, d_in, d_v] -> [S, H*d_v]."""
    S, d_in = x.shape
    H, _, d_kq = wq.shape
    d_v = wv.shape[-1]
    scale = 1.0 / (float(d_kq) ** 0.5)

    G = _heads_per_step(H, d_v)            # heads per group (lane-dense stripe)
    num_groups = H // G
    d_kq_p = _pad_dim(d_kq)                # lane-aligned per-head q/k stride
    tq = _pick_tile(S, tq_target)          # >=256 targets keep the v6e MXU filled
    tkv = _pick_tile(S, tkv_target)
    assert S % tq == 0 and S % tkv == 0

    gw = G * (2 * d_kq_p + d_v)            # fused slab width per group
    w_fused = jnp.concatenate(
        [_fuse_heads(wq, G, d_kq_p), _fuse_heads(wk, G, d_kq_p),
         _fuse_heads(wv, G, d_v)], axis=-1).astype(compute_dtype)

    kernel = functools.partial(_mha_flash_kernel, G=G, d_kq_p=d_kq_p, d_v=d_v,
                               scale=scale, compute_dtype=compute_dtype)

    nq, nk = S // tq, S // tkv
    x_bytes = S * d_in * x.dtype.itemsize
    cost = pl.CostEstimate(
        flops=2 * S * d_in * H * (d_kq_p + nq * (d_kq_p + d_v))
        + 2 * H * S * S * (d_kq_p + d_v),
        transcendentals=H * S * S,
        bytes_accessed=num_groups * (1 + nq) * x_bytes
        + int(w_fused.size) * w_fused.dtype.itemsize
        + S * H * d_v * x.dtype.itemsize,
    )

    out = pl.pallas_call(
        kernel,
        out_shape=jax.ShapeDtypeStruct((S, H * d_v), x.dtype),
        grid_spec=pltpu.PrefetchScalarGridSpec(
            num_scalar_prefetch=0,
            grid=(num_groups, nq, nk),     # kv (reduction) innermost
            in_specs=[
                # query rows of x (re-used across the whole kv sweep)
                pl.BlockSpec((tq, d_in), lambda g, i, j: (i, 0)),
                # key/value rows of x
                pl.BlockSpec((tkv, d_in), lambda g, i, j: (j, 0)),
                # per-group fused QKV slab; squeezed leading group dim
                pl.BlockSpec((None, d_in, gw), lambda g, i, j: (g, 0, 0)),
            ],
            # query tile i of head group g writes the lane-dense stripe (i, g);
            # constant across j => resident accumulator, stored once.
            out_specs=pl.BlockSpec((tq, G * d_v), lambda g, i, j: (i, g)),
            scratch_shapes=[
                pltpu.VMEM((tq, G * d_kq_p), compute_dtype),   # cached q
                pltpu.VMEM((G, tq, 1), jnp.float32),           # running max m
                pltpu.VMEM((G, tq, 1), jnp.float32),           # running sum l
                pltpu.VMEM((tq, G * d_v), jnp.float32),        # ctx accumulator
            ],
        ),
        compiler_params=pltpu.CompilerParams(
            # head groups and query tiles are independent -> megacore sharding;
            # the kv axis carries the online-softmax reduction.
            dimension_semantics=("parallel", "parallel", "arbitrary"),
            vmem_limit_bytes=_vmem_limit_bytes(),
        ),
        cost_estimate=cost,
    )(x, x, w_fused)
    return out


# ---------------------------------------------------------------------------
# Pure-JAX reference (PyTorch forward semantics) and self-test
# ---------------------------------------------------------------------------
def reference(x, wq, wk, wv):
    d_kq = wq.shape[-1]
    outs = []
    for h in range(wq.shape[0]):
        q = x @ wq[h]
        k = x @ wk[h]
        v = x @ wv[h]
        w = jax.nn.softmax((q @ k.T) / (d_kq ** 0.5), axis=-1)
        outs.append(w @ v)
    return jnp.concatenate(outs, axis=-1)


def _make_inputs(key, d_in, d_kq, d_v, H, S):
    kx, kq, kk, kv = jax.random.split(key, 4)
    x = jax.random.normal(kx, (S, d_in), jnp.float32)
    wq = jax.random.uniform(kq, (H, d_in, d_kq), jnp.float32)   # torch.rand
    wk = jax.random.uniform(kk, (H, d_in, d_kq), jnp.float32)
    wv = jax.random.uniform(kv, (H, d_in, d_v), jnp.float32)
    return x, wq, wk, wv


if __name__ == "__main__":
    key = jax.random.PRNGKey(0)
    k1, k2 = jax.random.split(key)

    # --- Config 1: the module's demo sizes (single tile, G == H fallback) ---
    x, wq, wk, wv = _make_inputs(k1, d_in=4, d_kq=8, d_v=8, H=4, S=8)
    ref = reference(x, wq, wk, wv)

    out_f32 = jax.block_until_ready(
        multi_head_attention(x, wq, wk, wv, compute_dtype=jnp.float32))
    assert out_f32.shape == ref.shape
    # approx EUP reciprocal => not bit-exact, but well inside 1e-2.
    assert jnp.allclose(out_f32, ref, atol=1e-2, rtol=1e-2)

    out_bf16 = jax.block_until_ready(multi_head_attention(x, wq, wk, wv))
    assert out_bf16.shape == ref.shape
    assert bool(jnp.all(jnp.isfinite(out_bf16)))
    assert float(jnp.max(jnp.abs(out_bf16 - ref))) < 0.25

    # --- Config 2: exercises the tiled flash path (grid (2,2,2), head groups,
    #     multi-step online softmax, 128-lane padded d_kq segments) ----------
    x2, wq2, wk2, wv2 = _make_inputs(k2, d_in=32, d_kq=64, d_v=64, H=4, S=512)
    ref2 = reference(x2, wq2, wk2, wv2)

    out2_f32 = jax.block_until_ready(
        multi_head_attention(x2, wq2, wk2, wv2, compute_dtype=jnp.float32))
    assert out2_f32.shape == ref2.shape
    assert jnp.allclose(out2_f32, ref2, atol=2e-2, rtol=2e-2)

    out2_bf16 = jax.block_until_ready(multi_head_attention(x2, wq2, wk2, wv2))
    assert out2_bf16.shape == ref2.shape
    assert bool(jnp.all(jnp.isfinite(out2_bf16)))

    print("KERNEL_OK")
</pallas_src>

<mosaic_0001>
module attributes {stable_mosaic.version = 11 : i64} {
  func.func @_mha_flash_kernel(%arg0: i32, %arg1: i32, %arg2: i32, %arg3: memref<8x4xf32, #tpu.memory_space<vmem>>, %arg4: memref<8x4xf32, #tpu.memory_space<vmem>>, %arg5: memref<1x4x96xf32, #tpu.memory_space<vmem>>, %arg6: memref<8x32xf32, #tpu.memory_space<vmem>>, %arg7: memref<8x32xf32, #tpu.memory_space<vmem>>, %arg8: memref<4x8x1xf32, #tpu.memory_space<vmem>>, %arg9: memref<4x8x1xf32, #tpu.memory_space<vmem>>, %arg10: memref<8x32xf32, #tpu.memory_space<vmem>>) attributes {dimension_semantics = [#tpu.dimension_semantics<parallel>, #tpu.dimension_semantics<parallel>, #tpu.dimension_semantics<arbitrary>], iteration_bounds = array<i64: 1, 1, 1>, scalar_prefetch = 0 : i64, scratch_operands = 4 : i64, tpu.core_type = #tpu.core_type<tc>, window_params = [{transform_indices = @transform_0, window_bounds = array<i64: 8, 4>}, {transform_indices = @transform_1, window_bounds = array<i64: 8, 4>}, {transform_indices = @transform_2, window_bounds = array<i64: 1, 4, 96>}, {transform_indices = @transform_3, window_bounds = array<i64: 8, 32>}]} {
    %c0 = arith.constant 0 : index
    %c0_0 = arith.constant 0 : index
    %c0_1 = arith.constant 0 : index
    %0 = vector.load %arg5[%c0, %c0_0, %c0_1] : memref<1x4x96xf32, #tpu.memory_space<vmem>>, vector<1x4x32xf32>
    %1 = vector.shape_cast %0 : vector<1x4x32xf32> to vector<4x32xf32>
    %c0_2 = arith.constant 0 : index
    %c0_3 = arith.constant 0 : index
    %c32 = arith.constant 32 : index
    %2 = vector.load %arg5[%c0_2, %c0_3, %c32] : memref<1x4x96xf32, #tpu.memory_space<vmem>>, vector<1x4x64xf32>
    %3 = vector.shape_cast %2 : vector<1x4x64xf32> to vector<4x64xf32>
    %c0_i32 = arith.constant 0 : i32
    %4 = arith.cmpi eq, %arg2, %c0_i32 : i32
    %5 = arith.extui %4 : i1 to i32
    %c0_i32_4 = arith.constant 0 : i32
    %6 = arith.cmpi ne, %5, %c0_i32_4 : i32
    scf.if %6 {
      %cst_91 = arith.constant 0xFF800000 : f32
      %142 = vector.broadcast %cst_91 : f32 to vector<4x8x1xf32>
      %c0_92 = arith.constant 0 : index
      %c0_93 = arith.constant 0 : index
      %c0_94 = arith.constant 0 : index
      %143 = vector.load %arg8[%c0_92, %c0_93, %c0_94] : memref<4x8x1xf32, #tpu.memory_space<vmem>>, vector<4x8x1xf32>
      tpu.vector_store %arg8[%c0_92, %c0_93, %c0_94], %142 {strides = array<i32>} : memref<4x8x1xf32, #tpu.memory_space<vmem>>, vector<4x8x1xf32>,
      %cst_95 = arith.constant 0.000000e+00 : f32
      %144 = vector.broadcast %cst_95 : f32 to vector<4x8x1xf32>
      %c0_96 = arith.constant 0 : index
      %c0_97 = arith.constant 0 : index
      %c0_98 = arith.constant 0 : index
      %145 = vector.load %arg9[%c0_96, %c0_97, %c0_98] : memref<4x8x1xf32, #tpu.memory_space<vmem>>, vector<4x8x1xf32>
      tpu.vector_store %arg9[%c0_96, %c0_97, %c0_98], %144 {strides = array<i32>} : memref<4x8x1xf32, #tpu.memory_space<vmem>>, vector<4x8x1xf32>,
      %cst_99 = arith.constant 0.000000e+00 : f32
      %146 = vector.broadcast %cst_99 : f32 to vector<8x32xf32>
      %c0_100 = arith.constant 0 : index
      %c0_101 = arith.constant 0 : index
      %147 = vector.load %arg10[%c0_100, %c0_101] : memref<8x32xf32, #tpu.memory_space<vmem>>, vector<8x32xf32>
      tpu.vector_store %arg10[%c0_100, %c0_101], %146 {strides = array<i32>} : memref<8x32xf32, #tpu.memory_space<vmem>>, vector<8x32xf32>,
      %c0_102 = arith.constant 0 : index
      %c0_103 = arith.constant 0 : index
      %148 = vector.load %arg3[%c0_102, %c0_103] : memref<8x4xf32, #tpu.memory_space<vmem>>, vector<8x4xf32>
      %cst_104 = arith.constant dense<0.000000e+00> : vector<8x32xf32>
      %149 = tpu.matmul %148, %1, %cst_104 {dimension_numbers = #tpu.dot_dimension_numbers<[1], [0], [0], [1], [0, 0, 1, 1], [], []>} : vector<8x4xf32>, vector<4x32xf32>, vector<8x32xf32> -> vector<8x32xf32>
      %cst_105 = arith.constant 0.353553385 : f32
      %150 = vector.broadcast %cst_105 : f32 to vector<8x32xf32>
      %151 = arith.mulf %149, %150 : vector<8x32xf32>
      %c0_106 = arith.constant 0 : index
      %c0_107 = arith.constant 0 : index
      %152 = vector.load %arg7[%c0_106, %c0_107] : memref<8x32xf32, #tpu.memory_space<vmem>>, vector<8x32xf32>
      tpu.vector_store %arg7[%c0_106, %c0_107], %151 {strides = array<i32>} : memref<8x32xf32, #tpu.memory_space<vmem>>, vector<8x32xf32>,
    } else {
    }
    %c0_5 = arith.constant 0 : index
    %c0_6 = arith.constant 0 : index
    %7 = vector.load %arg4[%c0_5, %c0_6] : memref<8x4xf32, #tpu.memory_space<vmem>>, vector<8x4xf32>
    %cst = arith.constant dense<0.000000e+00> : vector<8x64xf32>
    %8 = tpu.matmul %7, %3, %cst {dimension_numbers = #tpu.dot_dimension_numbers<[1], [0], [0], [1], [0, 0, 1, 1], [], []>} : vector<8x4xf32>, vector<4x64xf32>, vector<8x64xf32> -> vector<8x64xf32>
    %9 = vector.extract_strided_slice %8 {offsets = [0, 0], sizes = [8, 32], strides = [1, 1]} : vector<8x64xf32> to vector<8x32xf32>
    %10 = vector.extract_strided_slice %8 {offsets = [0, 32], sizes = [8, 32], strides = [1, 1]} : vector<8x64xf32> to vector<8x32xf32>
    %c0_7 = arith.constant 0 : index
    %c0_8 = arith.constant 0 : index
    %11 = vector.load %arg7[%c0_7, %c0_8] : memref<8x32xf32, #tpu.memory_space<vmem>>, vector<8x8xf32>
    %12 = vector.extract_strided_slice %9 {offsets = [0, 0], sizes = [8, 8], strides = [1, 1]} : vector<8x32xf32> to vector<8x8xf32>
    %13 = vector.extract_strided_slice %10 {offsets = [0, 0], sizes = [8, 8], strides = [1, 1]} : vector<8x32xf32> to vector<8x8xf32>
    %cst_9 = arith.constant dense<0.000000e+00> : vector<8x8xf32>
    %14 = tpu.matmul %11, %12, %cst_9 {dimension_numbers = #tpu.dot_dimension_numbers<[1], [1], [0], [0], [0, 0, 1, 0], [], []>} : vector<8x8xf32>, vector<8x8xf32>, vector<8x8xf32> -> vector<8x8xf32>
    %c0_10 = arith.constant 0 : index
    %c0_11 = arith.constant 0 : index
    %c0_12 = arith.constant 0 : index
    %15 = vector.load %arg8[%c0_10, %c0_11, %c0_12] : memref<4x8x1xf32, #tpu.memory_space<vmem>>, vector<1x8x1xf32>
    %16 = vector.shape_cast %15 : vector<1x8x1xf32> to vector<8x1xf32>
    %cst_13 = arith.constant dense<0xFF800000> : vector<8xf32>
    %17 = vector.multi_reduction <maximumf>, %14, %cst_13 [1] : vector<8x8xf32> to vector<8xf32>
    %18 = vector.shape_cast %17 : vector<8xf32> to vector<8x1xf32>
    %19 = arith.maximumf %16, %18 : vector<8x1xf32>
    %20 = arith.subf %16, %19 : vector<8x1xf32>
    %21 = math.exp %20 : vector<8x1xf32>
    %22 = vector.broadcast %19 : vector<8x1xf32> to vector<8x8xf32>
    %23 = arith.subf %14, %22 : vector<8x8xf32>
    %24 = math.exp %23 : vector<8x8xf32>
    %c0_14 = arith.constant 0 : index
    %c0_15 = arith.constant 0 : index
    %c0_16 = arith.constant 0 : index
    %25 = vector.load %arg9[%c0_14, %c0_15, %c0_16] : memref<4x8x1xf32, #tpu.memory_space<vmem>>, vector<1x8x1xf32>
    %26 = vector.shape_cast %25 : vector<1x8x1xf32> to vector<8x1xf32>
    %27 = arith.mulf %21, %26 : vector<8x1xf32>
    %cst_17 = arith.constant dense<0.000000e+00> : vector<8xf32>
    %28 = vector.multi_reduction <add>, %24, %cst_17 [1] : vector<8x8xf32> to vector<8xf32>
    %29 = vector.shape_cast %28 : vector<8xf32> to vector<8x1xf32>
    %30 = arith.addf %27, %29 : vector<8x1xf32>
    %c0_18 = arith.constant 0 : index
    %c0_19 = arith.constant 0 : index
    %c0_20 = arith.constant 0 : index
    %31 = vector.load %arg9[%c0_18, %c0_19, %c0_20] : memref<4x8x1xf32, #tpu.memory_space<vmem>>, vector<1x8x1xf32>
    %32 = vector.shape_cast %31 : vector<1x8x1xf32> to vector<8x1xf32>
    %33 = vector.shape_cast %30 : vector<8x1xf32> to vector<1x8x1xf32>
    tpu.vector_store %arg9[%c0_18, %c0_19, %c0_20], %33 {strides = array<i32>} : memref<4x8x1xf32, #tpu.memory_space<vmem>>, vector<1x8x1xf32>,
    %c0_21 = arith.constant 0 : index
    %c0_22 = arith.constant 0 : index
    %c0_23 = arith.constant 0 : index
    %34 = vector.load %arg8[%c0_21, %c0_22, %c0_23] : memref<4x8x1xf32, #tpu.memory_space<vmem>>, vector<1x8x1xf32>
    %35 = vector.shape_cast %34 : vector<1x8x1xf32> to vector<8x1xf32>
    %36 = vector.shape_cast %19 : vector<8x1xf32> to vector<1x8x1xf32>
    tpu.vector_store %arg8[%c0_21, %c0_22, %c0_23], %36 {strides = array<i32>} : memref<4x8x1xf32, #tpu.memory_space<vmem>>, vector<1x8x1xf32>,
    %c0_24 = arith.constant 0 : index
    %c0_25 = arith.constant 0 : index
    %37 = vector.load %arg10[%c0_24, %c0_25] : memref<8x32xf32, #tpu.memory_space<vmem>>, vector<8x8xf32>
    %38 = vector.broadcast %21 : vector<8x1xf32> to vector<8x8xf32>
    %39 = arith.mulf %38, %37 : vector<8x8xf32>
    %cst_26 = arith.constant dense<0.000000e+00> : vector<8x8xf32>
    %40 = tpu.matmul %24, %13, %cst_26 {dimension_numbers = #tpu.dot_dimension_numbers<[1], [0], [0], [1], [0, 0, 1, 1], [], []>} : vector<8x8xf32>, vector<8x8xf32>, vector<8x8xf32> -> vector<8x8xf32>
    %41 = arith.addf %39, %40 : vector<8x8xf32>
    %c0_27 = arith.constant 0 : index
    %c0_28 = arith.constant 0 : index
    %42 = vector.load %arg10[%c0_27, %c0_28] : memref<8x32xf32, #tpu.memory_space<vmem>>, vector<8x8xf32>
    tpu.vector_store %arg10[%c0_27, %c0_28], %41 {strides = array<i32>} : memref<8x32xf32, #tpu.memory_space<vmem>>, vector<8x8xf32>,
    %c0_29 = arith.constant 0 : index
    %c8 = arith.constant 8 : index
    %43 = vector.load %arg7[%c0_29, %c8] : memref<8x32xf32, #tpu.memory_space<vmem>>, vector<8x8xf32>
    %44 = vector.extract_strided_slice %9 {offsets = [0, 8], sizes = [8, 8], strides = [1, 1]} : vector<8x32xf32> to vector<8x8xf32>
    %45 = vector.extract_strided_slice %10 {offsets = [0, 8], sizes = [8, 8], strides = [1, 1]} : vector<8x32xf32> to vector<8x8xf32>
    %cst_30 = arith.constant dense<0.000000e+00> : vector<8x8xf32>
    %46 = tpu.matmul %43, %44, %cst_30 {dimension_numbers = #tpu.dot_dimension_numbers<[1], [1], [0], [0], [0, 0, 1, 0], [], []>} : vector<8x8xf32>, vector<8x8xf32>, vector<8x8xf32> -> vector<8x8xf32>
    %c1 = arith.constant 1 : index
    %c0_31 = arith.constant 0 : index
    %c0_32 = arith.constant 0 : index
    %47 = vector.load %arg8[%c1, %c0_31, %c0_32] : memref<4x8x1xf32, #tpu.memory_space<vmem>>, vector<1x8x1xf32>
    %48 = vector.shape_cast %47 : vector<1x8x1xf32> to vector<8x1xf32>
    %cst_33 = arith.constant dense<0xFF800000> : vector<8xf32>
    %49 = vector.multi_reduction <maximumf>, %46, %cst_33 [1] : vector<8x8xf32> to vector<8xf32>
    %50 = vector.shape_cast %49 : vector<8xf32> to vector<8x1xf32>
    %51 = arith.maximumf %48, %50 : vector<8x1xf32>
    %52 = arith.subf %48, %51 : vector<8x1xf32>
    %53 = math.exp %52 : vector<8x1xf32>
    %54 = vector.broadcast %51 : vector<8x1xf32> to vector<8x8xf32>
    %55 = arith.subf %46, %54 : vector<8x8xf32>
    %56 = math.exp %55 : vector<8x8xf32>
    %c1_34 = arith.constant 1 : index
    %c0_35 = arith.constant 0 : index
    %c0_36 = arith.constant 0 : index
    %57 = vector.load %arg9[%c1_34, %c0_35, %c0_36] : memref<4x8x1xf32, #tpu.memory_space<vmem>>, vector<1x8x1xf32>
    %58 = vector.shape_cast %57 : vector<1x8x1xf32> to vector<8x1xf32>
    %59 = arith.mulf %53, %58 : vector<8x1xf32>
    %cst_37 = arith.constant dense<0.000000e+00> : vector<8xf32>
    %60 = vector.multi_reduction <add>, %56, %cst_37 [1] : vector<8x8xf32> to vector<8xf32>
    %61 = vector.shape_cast %60 : vector<8xf32> to vector<8x1xf32>
    %62 = arith.addf %59, %61 : vector<8x1xf32>
    %c1_38 = arith.constant 1 : index
    %c0_39 = arith.constant 0 : index
    %c0_40 = arith.constant 0 : index
    %63 = vector.load %arg9[%c1_38, %c0_39, %c0_40] : memref<4x8x1xf32, #tpu.memory_space<vmem>>, vector<1x8x1xf32>
    %64 = vector.shape_cast %63 : vector<1x8x1xf32> to vector<8x1xf32>
    %65 = vector.shape_cast %62 : vector<8x1xf32> to vector<1x8x1xf32>
    tpu.vector_store %arg9[%c1_38, %c0_39, %c0_40], %65 {strides = array<i32>} : memref<4x8x1xf32, #tpu.memory_space<vmem>>, vector<1x8x1xf32>,
    %c1_41 = arith.constant 1 : index
    %c0_42 = arith.constant 0 : index
    %c0_43 = arith.constant 0 : index
    %66 = vector.load %arg8[%c1_41, %c0_42, %c0_43] : memref<4x8x1xf32, #tpu.memory_space<vmem>>, vector<1x8x1xf32>
    %67 = vector.shape_cast %66 : vector<1x8x1xf32> to vector<8x1xf32>
    %68 = vector.shape_cast %51 : vector<8x1xf32> to vector<1x8x1xf32>
    tpu.vector_store %arg8[%c1_41, %c0_42, %c0_43], %68 {strides = array<i32>} : memref<4x8x1xf32, #tpu.memory_space<vmem>>, vector<1x8x1xf32>,
    %c0_44 = arith.constant 0 : index
    %c8_45 = arith.constant 8 : index
    %69 = vector.load %arg10[%c0_44, %c8_45] : memref<8x32xf32, #tpu.memory_space<vmem>>, vector<8x8xf32>
    %70 = vector.broadcast %53 : vector<8x1xf32> to vector<8x8xf32>
    %71 = arith.mulf %70, %69 : vector<8x8xf32>
    %cst_46 = arith.constant dense<0.000000e+00> : vector<8x8xf32>
    %72 = tpu.matmul %56, %45, %cst_46 {dimension_numbers = #tpu.dot_dimension_numbers<[1], [0], [0], [1], [0, 0, 1, 1], [], []>} : vector<8x8xf32>, vector<8x8xf32>, vector<8x8xf32> -> vector<8x8xf32>
    %73 = arith.addf %71, %72 : vector<8x8xf32>
    %c0_47 = arith.constant 0 : index
    %c8_48 = arith.constant 8 : index
    %74 = vector.load %arg10[%c0_47, %c8_48] : memref<8x32xf32, #tpu.memory_space<vmem>>, vector<8x8xf32>
    tpu.vector_store %arg10[%c0_47, %c8_48], %73 {strides = array<i32>} : memref<8x32xf32, #tpu.memory_space<vmem>>, vector<8x8xf32>,
    %c0_49 = arith.constant 0 : index
    %c16 = arith.constant 16 : index
    %75 = vector.load %arg7[%c0_49, %c16] : memref<8x32xf32, #tpu.memory_space<vmem>>, vector<8x8xf32>
    %76 = vector.extract_strided_slice %9 {offsets = [0, 16], sizes = [8, 8], strides = [1, 1]} : vector<8x32xf32> to vector<8x8xf32>
    %77 = vector.extract_strided_slice %10 {offsets = [0, 16], sizes = [8, 8], strides = [1, 1]} : vector<8x32xf32> to vector<8x8xf32>
    %cst_50 = arith.constant dense<0.000000e+00> : vector<8x8xf32>
    %78 = tpu.matmul %75, %76, %cst_50 {dimension_numbers = #tpu.dot_dimension_numbers<[1], [1], [0], [0], [0, 0, 1, 0], [], []>} : vector<8x8xf32>, vector<8x8xf32>, vector<8x8xf32> -> vector<8x8xf32>
    %c2 = arith.constant 2 : index
    %c0_51 = arith.constant 0 : index
    %c0_52 = arith.constant 0 : index
    %79 = vector.load %arg8[%c2, %c0_51, %c0_52] : memref<4x8x1xf32, #tpu.memory_space<vmem>>, vector<1x8x1xf32>
    %80 = vector.shape_cast %79 : vector<1x8x1xf32> to vector<8x1xf32>
    %cst_53 = arith.constant dense<0xFF800000> : vector<8xf32>
    %81 = vector.multi_reduction <maximumf>, %78, %cst_53 [1] : vector<8x8xf32> to vector<8xf32>
    %82 = vector.shape_cast %81 : vector<8xf32> to vector<8x1xf32>
    %83 = arith.maximumf %80, %82 : vector<8x1xf32>
    %84 = arith.subf %80, %83 : vector<8x1xf32>
    %85 = math.exp %84 : vector<8x1xf32>
    %86 = vector.broadcast %83 : vector<8x1xf32> to vector<8x8xf32>
    %87 = arith.subf %78, %86 : vector<8x8xf32>
    %88 = math.exp %87 : vector<8x8xf32>
    %c2_54 = arith.constant 2 : index
    %c0_55 = arith.constant 0 : index
    %c0_56 = arith.constant 0 : index
    %89 = vector.load %arg9[%c2_54, %c0_55, %c0_56] : memref<4x8x1xf32, #tpu.memory_space<vmem>>, vector<1x8x1xf32>
    %90 = vector.shape_cast %89 : vector<1x8x1xf32> to vector<8x1xf32>
    %91 = arith.mulf %85, %90 : vector<8x1xf32>
    %cst_57 = arith.constant dense<0.000000e+00> : vector<8xf32>
    %92 = vector.multi_reduction <add>, %88, %cst_57 [1] : vector<8x8xf32> to vector<8xf32>
    %93 = vector.shape_cast %92 : vector<8xf32> to vector<8x1xf32>
    %94 = arith.addf %91, %93 : vector<8x1xf32>
    %c2_58 = arith.constant 2 : index
    %c0_59 = arith.constant 0 : index
    %c0_60 = arith.constant 0 : index
    %95 = vector.load %arg9[%c2_58, %c0_59, %c0_60] : memref<4x8x1xf32, #tpu.memory_space<vmem>>, vector<1x8x1xf32>
    %96 = vector.shape_cast %95 : vector<1x8x1xf32> to vector<8x1xf32>
    %97 = vector.shape_cast %94 : vector<8x1xf32> to vector<1x8x1xf32>
    tpu.vector_store %arg9[%c2_58, %c0_59, %c0_60], %97 {strides = array<i32>} : memref<4x8x1xf32, #tpu.memory_space<vmem>>, vector<1x8x1xf32>,
    %c2_61 = arith.constant 2 : index
    %c0_62 = arith.constant 0 : index
    %c0_63 = arith.constant 0 : index
    %98 = vector.load %arg8[%c2_61, %c0_62, %c0_63] : memref<4x8x1xf32, #tpu.memory_space<vmem>>, vector<1x8x1xf32>
    %99 = vector.shape_cast %98 : vector<1x8x1xf32> to vector<8x1xf32>
    %100 = vector.shape_cast %83 : vector<8x1xf32> to vector<1x8x1xf32>
    tpu.vector_store %arg8[%c2_61, %c0_62, %c0_63], %100 {strides = array<i32>} : memref<4x8x1xf32, #tpu.memory_space<vmem>>, vector<1x8x1xf32>,
    %c0_64 = arith.constant 0 : index
    %c16_65 = arith.constant 16 : index
    %101 = vector.load %arg10[%c0_64, %c16_65] : memref<8x32xf32, #tpu.memory_space<vmem>>, vector<8x8xf32>
    %102 = vector.broadcast %85 : vector<8x1xf32> to vector<8x8xf32>
    %103 = arith.mulf %102, %101 : vector<8x8xf32>
    %cst_66 = arith.constant dense<0.000000e+00> : vector<8x8xf32>
    %104 = tpu.matmul %88, %77, %cst_66 {dimension_numbers = #tpu.dot_dimension_numbers<[1], [0], [0], [1], [0, 0, 1, 1], [], []>} : vector<8x8xf32>, vector<8x8xf32>, vector<8x8xf32> -> vector<8x8xf32>
    %105 = arith.addf %103, %104 : vector<8x8xf32>
    %c0_67 = arith.constant 0 : index
    %c16_68 = arith.constant 16 : index
    %106 = vector.load %arg10[%c0_67, %c16_68] : memref<8x32xf32, #tpu.memory_space<vmem>>, vector<8x8xf32>
    tpu.vector_store %arg10[%c0_67, %c16_68], %105 {strides = array<i32>} : memref<8x32xf32, #tpu.memory_space<vmem>>, vector<8x8xf32>,
    %c0_69 = arith.constant 0 : index
    %c24 = arith.constant 24 : index
    %107 = vector.load %arg7[%c0_69, %c24] : memref<8x32xf32, #tpu.memory_space<vmem>>, vector<8x8xf32>
    %108 = vector.extract_strided_slice %9 {offsets = [0, 24], sizes = [8, 8], strides = [1, 1]} : vector<8x32xf32> to vector<8x8xf32>
    %109 = vector.extract_strided_slice %10 {offsets = [0, 24], sizes = [8, 8], strides = [1, 1]} : vector<8x32xf32> to vector<8x8xf32>
    %cst_70 = arith.constant dense<0.000000e+00> : vector<8x8xf32>
    %110 = tpu.matmul %107, %108, %cst_70 {dimension_numbers = #tpu.dot_dimension_numbers<[1], [1], [0], [0], [0, 0, 1, 0], [], []>} : vector<8x8xf32>, vector<8x8xf32>, vector<8x8xf32> -> vector<8x8xf32>
    %c3 = arith.constant 3 : index
    %c0_71 = arith.constant 0 : index
    %c0_72 = arith.constant 0 : index
    %111 = vector.load %arg8[%c3, %c0_71, %c0_72] : memref<4x8x1xf32, #tpu.memory_space<vmem>>, vector<1x8x1xf32>
    %112 = vector.shape_cast %111 : vector<1x8x1xf32> to vector<8x1xf32>
    %cst_73 = arith.constant dense<0xFF800000> : vector<8xf32>
    %113 = vector.multi_reduction <maximumf>, %110, %cst_73 [1] : vector<8x8xf32> to vector<8xf32>
    %114 = vector.shape_cast %113 : vector<8xf32> to vector<8x1xf32>
    %115 = arith.maximumf %112, %114 : vector<8x1xf32>
    %116 = arith.subf %112, %115 : vector<8x1xf32>
    %117 = math.exp %116 : vector<8x1xf32>
    %118 = vector.broadcast %115 : vector<8x1xf32> to vector<8x8xf32>
    %119 = arith.subf %110, %118 : vector<8x8xf32>
    %120 = math.exp %119 : vector<8x8xf32>
    %c3_74 = arith.constant 3 : index
    %c0_75 = arith.constant 0 : index
    %c0_76 = arith.constant 0 : index
    %121 = vector.load %arg9[%c3_74, %c0_75, %c0_76] : memref<4x8x1xf32, #tpu.memory_space<vmem>>, vector<1x8x1xf32>
    %122 = vector.shape_cast %121 : vector<1x8x1xf32> to vector<8x1xf32>
    %123 = arith.mulf %117, %122 : vector<8x1xf32>
    %cst_77 = arith.constant dense<0.000000e+00> : vector<8xf32>
    %124 = vector.multi_reduction <add>, %120, %cst_77 [1] : vector<8x8xf32> to vector<8xf32>
    %125 = vector.shape_cast %124 : vector<8xf32> to vector<8x1xf32>
    %126 = arith.addf %123, %125 : vector<8x1xf32>
    %c3_78 = arith.constant 3 : index
    %c0_79 = arith.constant 0 : index
    %c0_80 = arith.constant 0 : index
    %127 = vector.load %arg9[%c3_78, %c0_79, %c0_80] : memref<4x8x1xf32, #tpu.memory_space<vmem>>, vector<1x8x1xf32>
    %128 = vector.shape_cast %127 : vector<1x8x1xf32> to vector<8x1xf32>
    %129 = vector.shape_cast %126 : vector<8x1xf32> to vector<1x8x1xf32>
    tpu.vector_store %arg9[%c3_78, %c0_79, %c0_80], %129 {strides = array<i32>} : memref<4x8x1xf32, #tpu.memory_space<vmem>>, vector<1x8x1xf32>,
    %c3_81 = arith.constant 3 : index
    %c0_82 = arith.constant 0 : index
    %c0_83 = arith.constant 0 : index
    %130 = vector.load %arg8[%c3_81, %c0_82, %c0_83] : memref<4x8x1xf32, #tpu.memory_space<vmem>>, vector<1x8x1xf32>
    %131 = vector.shape_cast %130 : vector<1x8x1xf32> to vector<8x1xf32>
    %132 = vector.shape_cast %115 : vector<8x1xf32> to vector<1x8x1xf32>
    tpu.vector_store %arg8[%c3_81, %c0_82, %c0_83], %132 {strides = array<i32>} : memref<4x8x1xf32, #tpu.memory_space<vmem>>, vector<1x8x1xf32>,
    %c0_84 = arith.constant 0 : index
    %c24_85 = arith.constant 24 : index
    %133 = vector.load %arg10[%c0_84, %c24_85] : memref<8x32xf32, #tpu.memory_space<vmem>>, vector<8x8xf32>
    %134 = vector.broadcast %117 : vector<8x1xf32> to vector<8x8xf32>
    %135 = arith.mulf %134, %133 : vector<8x8xf32>
    %cst_86 = arith.constant dense<0.000000e+00> : vector<8x8xf32>
    %136 = tpu.matmul %120, %109, %cst_86 {dimension_numbers = #tpu.dot_dimension_numbers<[1], [0], [0], [1], [0, 0, 1, 1], [], []>} : vector<8x8xf32>, vector<8x8xf32>, vector<8x8xf32> -> vector<8x8xf32>
    %137 = arith.addf %135, %136 : vector<8x8xf32>
    %c0_87 = arith.constant 0 : index
    %c24_88 = arith.constant 24 : index
    %138 = vector.load %arg10[%c0_87, %c24_88] : memref<8x32xf32, #tpu.memory_space<vmem>>, vector<8x8xf32>
    tpu.vector_store %arg10[%c0_87, %c24_88], %137 {strides = array<i32>} : memref<8x32xf32, #tpu.memory_space<vmem>>, vector<8x8xf32>,
    %c0_i32_89 = arith.constant 0 : i32
    %139 = arith.cmpi eq, %arg2, %c0_i32_89 : i32
    %140 = arith.extui %139 : i1 to i32
    %c0_i32_90 = arith.constant 0 : i32
    %141 = arith.cmpi ne, %140, %c0_i32_90 : i32
    scf.if %141 {
      %c0_91 = arith.constant 0 : index
      %c0_92 = arith.constant 0 : index
      %142 = vector.load %arg10[%c0_91, %c0_92] : memref<8x32xf32, #tpu.memory_space<vmem>>, vector<8x8xf32>
      %c0_93 = arith.constant 0 : index
      %c0_94 = arith.constant 0 : index
      %c0_95 = arith.constant 0 : index
      %143 = vector.load %arg9[%c0_93, %c0_94, %c0_95] : memref<4x8x1xf32, #tpu.memory_space<vmem>>, vector<1x8x1xf32>
      %144 = vector.shape_cast %143 : vector<1x8x1xf32> to vector<8x1xf32>
      %145 = tpu.reciprocal %144 {approx = true} : vector<8x1xf32> -> vector<8x1xf32>
      %146 = vector.broadcast %145 : vector<8x1xf32> to vector<8x8xf32>
      %147 = arith.mulf %142, %146 : vector<8x8xf32>
      %c0_96 = arith.constant 0 : index
      %c0_97 = arith.constant 0 : index
      %148 = vector.load %arg10[%c0_96, %c0_97] : memref<8x32xf32, #tpu.memory_space<vmem>>, vector<8x8xf32>
      tpu.vector_store %arg10[%c0_96, %c0_97], %147 {strides = array<i32>} : memref<8x32xf32, #tpu.memory_space<vmem>>, vector<8x8xf32>,
      %c0_98 = arith.constant 0 : index
      %c8_99 = arith.constant 8 : index
      %149 = vector.load %arg10[%c0_98, %c8_99] : memref<8x32xf32, #tpu.memory_space<vmem>>, vector<8x8xf32>
      %c1_100 = arith.constant 1 : index
      %c0_101 = arith.constant 0 : index
      %c0_102 = arith.constant 0 : index
      %150 = vector.load %arg9[%c1_100, %c0_101, %c0_102] : memref<4x8x1xf32, #tpu.memory_space<vmem>>, vector<1x8x1xf32>
      %151 = vector.shape_cast %150 : vector<1x8x1xf32> to vector<8x1xf32>
      %152 = tpu.reciprocal %151 {approx = true} : vector<8x1xf32> -> vector<8x1xf32>
      %153 = vector.broadcast %152 : vector<8x1xf32> to vector<8x8xf32>
      %154 = arith.mulf %149, %153 : vector<8x8xf32>
      %c0_103 = arith.constant 0 : index
      %c8_104 = arith.constant 8 : index
      %155 = vector.load %arg10[%c0_103, %c8_104] : memref<8x32xf32, #tpu.memory_space<vmem>>, vector<8x8xf32>
      tpu.vector_store %arg10[%c0_103, %c8_104], %154 {strides = array<i32>} : memref<8x32xf32, #tpu.memory_space<vmem>>, vector<8x8xf32>,
      %c0_105 = arith.constant 0 : index
      %c16_106 = arith.constant 16 : index
      %156 = vector.load %arg10[%c0_105, %c16_106] : memref<8x32xf32, #tpu.memory_space<vmem>>, vector<8x8xf32>
      %c2_107 = arith.constant 2 : index
      %c0_108 = arith.constant 0 : index
      %c0_109 = arith.constant 0 : index
      %157 = vector.load %arg9[%c2_107, %c0_108, %c0_109] : memref<4x8x1xf32, #tpu.memory_space<vmem>>, vector<1x8x1xf32>
      %158 = vector.shape_cast %157 : vector<1x8x1xf32> to vector<8x1xf32>
      %159 = tpu.reciprocal %158 {approx = true} : vector<8x1xf32> -> vector<8x1xf32>
      %160 = vector.broadcast %159 : vector<8x1xf32> to vector<8x8xf32>
      %161 = arith.mulf %156, %160 : vector<8x8xf32>
      %c0_110 = arith.constant 0 : index
      %c16_111 = arith.constant 16 : index
      %162 = vector.load %arg10[%c0_110, %c16_111] : memref<8x32xf32, #tpu.memory_space<vmem>>, vector<8x8xf32>
      tpu.vector_store %arg10[%c0_110, %c16_111], %161 {strides = array<i32>} : memref<8x32xf32, #tpu.memory_space<vmem>>, vector<8x8xf32>,
      %c0_112 = arith.constant 0 : index
      %c24_113 = arith.constant 24 : index
      %163 = vector.load %arg10[%c0_112, %c24_113] : memref<8x32xf32, #tpu.memory_space<vmem>>, vector<8x8xf32>
      %c3_114 = arith.constant 3 : index
      %c0_115 = arith.constant 0 : index
      %c0_116 = arith.constant 0 : index
      %164 = vector.load %arg9[%c3_114, %c0_115, %c0_116] : memref<4x8x1xf32, #tpu.memory_space<vmem>>, vector<1x8x1xf32>
      %165 = vector.shape_cast %164 : vector<1x8x1xf32> to vector<8x1xf32>
      %166 = tpu.reciprocal %165 {approx = true} : vector<8x1xf32> -> vector<8x1xf32>
      %167 = vector.broadcast %166 : vector<8x1xf32> to vector<8x8xf32>
      %168 = arith.mulf %163, %167 : vector<8x8xf32>
      %c0_117 = arith.constant 0 : index
      %c24_118 = arith.constant 24 : index
      %169 = vector.load %arg10[%c0_117, %c24_118] : memref<8x32xf32, #tpu.memory_space<vmem>>, vector<8x8xf32>
      tpu.vector_store %arg10[%c0_117, %c24_118], %168 {strides = array<i32>} : memref<8x32xf32, #tpu.memory_space<vmem>>, vector<8x8xf32>,
      %c0_119 = arith.constant 0 : index
      %c0_120 = arith.constant 0 : index
      %170 = vector.load %arg10[%c0_119, %c0_120] : memref<8x32xf32, #tpu.memory_space<vmem>>, vector<8x32xf32>
      %c0_121 = arith.constant 0 : index
      %c0_122 = arith.constant 0 : index
      %171 = vector.load %arg6[%c0_121, %c0_122] : memref<8x32xf32, #tpu.memory_space<vmem>>, vector<8x32xf32>
      tpu.vector_store %arg6[%c0_121, %c0_122], %170 {strides = array<i32>} : memref<8x32xf32, #tpu.memory_space<vmem>>, vector<8x32xf32>,
    } else {
    }
    return
  }
  func.func @transform_0(%arg0: i32, %arg1: i32, %arg2: i32) -> (i32, i32) {
    %c0_i32 = arith.constant 0 : i32
    %c0_i32_0 = arith.constant 0 : i32
    return %arg1, %c0_i32 : i32, i32
  }
  func.func @transform_1(%arg0: i32, %arg1: i32, %arg2: i32) -> (i32, i32) {
    %c0_i32 = arith.constant 0 : i32
    %c0_i32_0 = arith.constant 0 : i32
    return %arg2, %c0_i32 : i32, i32
  }
  func.func @transform_2(%arg0: i32, %arg1: i32, %arg2: i32) -> (i32, i32, i32) {
    %c0_i32 = arith.constant 0 : i32
    %c0_i32_0 = arith.constant 0 : i32
    %c0_i32_1 = arith.constant 0 : i32
    return %arg0, %c0_i32, %c0_i32_0 : i32, i32, i32
  }
  func.func @transform_3(%arg0: i32, %arg1: i32, %arg2: i32) -> (i32, i32) {
    %c0_i32 = arith.constant 0 : i32
    return %arg1, %arg0 : i32, i32
  }
}

</mosaic_0001>

<llo_original>
// kernel: tpu_custom_call.1
$region0: #{tpu_custom_call.1}
  #allocation0 [shape = 'u32[]', space=smem, size = 0x4, offset = 0x4, fixed_abs, tag = 'smem constant byte address 0x4 - core index']
  #allocation1 [shape = 'u32[144,128]{1,0:T(1,128)}', space=vmem, size = 0x12000, scoped, tag = 'internal scratch']
  #allocation2 [shape = 'f32[8,32]{1,0:T(8,128)}', space=vmem, size = 0x1000, scoped, tag = 'scratch operand']
  #allocation3 [shape = 'f32[4,8,1]{2,1,0:T(8,128)}', space=vmem, size = 0x4000, scoped, tag = 'scratch operand']
  #allocation4 [shape = 'f32[4,8,1]{2,1,0:T(8,128)}', space=vmem, size = 0x4000, scoped, tag = 'scratch operand']
  #allocation5 [shape = 'f32[8,32]{1,0:T(8,128)}', space=vmem, size = 0x1000, scoped, tag = 'scratch operand']
  %s0 = inlined_call_operand.vmem [shape: f32[8,4], index: 0, kind: input, shape index: {}]
  %s1 = inlined_call_operand.vmem [shape: f32[8,4], index: 1, kind: input, shape index: {}]
  %s2 = inlined_call_operand.vmem [shape: f32[1,4,96], index: 2, kind: input, shape index: {}]
  %s3 = inlined_call_operand.hbm [shape: f32[8,32], index: 3, kind: output, shape index: {}]
  %s4 = sld [smem:[#allocation0]]
  $region30: #{tpu_custom_call.1} parent=0
    _
  %s6 = ssub.s32 1, %s4
  %s7 = scalar_select 0, %s6, %s4
  $region1: #{tpu_custom_call.1} parent=0
    #allocation6 [shape = 'u8[4096]{0}', space=vmem, size = 0x1000, scoped, tag = 'output window, operand 0, single buffered']
    #allocation7 [shape = 's32[1]{0}', space=sflag, size = 0x4, scoped, tag = 'scoped memory for tpu_custom_call.1']
    %8 = vsyncpa [#allocation7], 0
    // Predicated region
    $region2: #{tpu_custom_call.1} parent=1 // pred_check
      _
    $region3: #{tpu_custom_call.1} parent=1 // pred_check_branch
      %10 = sbr.rel (0) target = $region5
    $region4: #{tpu_custom_call.1} parent=1 // pred_region
      _
    $region5: #{tpu_custom_call.1} parent=1 // pred_fallthru
      _
    // Predicated region
    $region6: #{tpu_custom_call.1} parent=1 // pred_check
      _
    $region7: #{tpu_custom_call.1} parent=1 // pred_check_branch
      %12 = sbr.rel (0) target = $region9
    $region8: #{tpu_custom_call.1} parent=1 // pred_region
      _
    $region9: #{tpu_custom_call.1} parent=1 // pred_fallthru
      _
    // Predicated region
    $region10: #{tpu_custom_call.1} parent=1 // pred_check
      _
    $region11: #{tpu_custom_call.1} parent=1 // pred_check_branch
      %14 = sbr.rel (0) target = $region13
    $region12: #{tpu_custom_call.1} parent=1 // pred_region
      _
    $region13: #{tpu_custom_call.1} parent=1 // pred_fallthru
      _
    %v15 = vld [vmem:[%s2] sm:$0xf]
    %p16 = scmp.eq.s32.totalorder 0, 0
    // Predicated region
    $region14: #{tpu_custom_call.1} parent=1 // pred_check
      %p17 = pneg %p16
    $region15: #{tpu_custom_call.1} parent=1 // pred_check_branch
      %19 = sbr.rel (%p17) target = $region17
    $region16: #{tpu_custom_call.1} parent=1 // pred_region
      %vm20 = vcmask 7168
      %21 = vst.msk [vmem:[#allocation3] sm:$0xff] %vm20, -inf
      %22 = vst.msk [vmem:[#allocation3 + $0x8] sm:$0xff] %vm20, -inf
      %23 = vst.msk [vmem:[#allocation3 + $0x10] sm:$0xff] %vm20, -inf
      %24 = vst.msk [vmem:[#allocation3 + $0x18] sm:$0xff] %vm20, -inf
      %25 = vst.msk [vmem:[#allocation4] sm:$0xff] %vm20, 0.0
      %26 = vst.msk [vmem:[#allocation4 + $0x8] sm:$0xff] %vm20, 0.0
      %27 = vst.msk [vmem:[#allocation4 + $0x10] sm:$0xff] %vm20, 0.0
      %28 = vst.msk [vmem:[#allocation4 + $0x18] sm:$0xff] %vm20, 0.0
      %vm29 = vcmask 261120
      %30 = vst.msk [vmem:[#allocation5] sm:$0xff] %vm29, 0.0
      %v31 = vld [vmem:[%s0] sm:$0xff]
      %vm32 = vcmask 31744
      %v34 = vsel %vm32, %v31, 0
      %vm36 = vcmask 1043456
      %v38 = vsel %vm36, %v15, 0
      %40 = vmatprep.subr.mxu0 0.0
      %41 = vmatpush1.msra.mxu0 %v38
      %42 = vmatprep.subr.mxu0 0.0
      %43 = vmatpush1.msra.mxu0 0.0
      %44 = vmatprep.subr.mxu0 0.0
      %45 = vmatpush1.msra.mxu0 0.0
      %46 = vmatprep.subr.mxu0 0.0
      %47 = vmatpush1.msra.mxu0 0.0
      %48 = vmatprep.subr.mxu0 0.0
      %49 = vmatpush1.msra.mxu0 0.0
      %50 = vmatprep.subr.mxu0 0.0
      %51 = vmatpush1.msra.mxu0 0.0
      %52 = vmatprep.subr.mxu0 0.0
      %53 = vmatpush1.msra.mxu0 0.0
      %54 = vmatprep.subr.mxu0 0.0
      %55 = vmatpush1.msra.mxu0 0.0
      %56 = vmatprep.subr.mxu0 0.0
      %57 = vmatpush1.msra.mxu0 0.0
      %58 = vmatprep.subr.mxu0 0.0
      %59 = vmatpush1.msra.mxu0 0.0
      %60 = vmatprep.subr.mxu0 0.0
      %61 = vmatpush1.msra.mxu0 0.0
      %62 = vmatprep.subr.mxu0 0.0
      %63 = vmatpush1.msra.mxu0 0.0
      %64 = vmatprep.subr.mxu0 0.0
      %65 = vmatpush1.msra.mxu0 0.0
      %66 = vmatprep.subr.mxu0 0.0
      %67 = vmatpush1.msra.mxu0 0.0
      %68 = vmatprep.subr.mxu0 0.0
      %69 = vmatpush1.msra.mxu0 0.0
      %70 = vmatprep.subr.mxu0 0.0
      %71 = vmatpush1.msra.mxu0 0.0
      %72 = vmatprep.subr.mxu0 0.0
      %73 = vmatpush1.msra.mxu0 0.0
      %74 = vmatprep.subr.mxu0 0.0
      %75 = vmatpush1.msra.mxu0 0.0
      %76 = vmatprep.subr.mxu0 0.0
      %77 = vmatpush1.msra.mxu0 0.0
      %78 = vmatprep.subr.mxu0 0.0
      %79 = vmatpush1.msra.mxu0 0.0
      %80 = vmatprep.subr.mxu0 0.0
      %81 = vmatpush1.msra.mxu0 0.0
      %82 = vmatprep.subr.mxu0 0.0
      %83 = vmatpush1.msra.mxu0 0.0
      %84 = vmatprep.subr.mxu0 0.0
      %85 = vmatpush1.msra.mxu0 0.0
      %86 = vmatprep.subr.mxu0 0.0
      %87 = vmatpush1.msra.mxu0 0.0
      %88 = vmatprep.subr.mxu0 0.0
      %89 = vmatpush1.msra.mxu0 0.0
      %90 = vmatprep.subr.mxu0 0.0
      %91 = vmatpush1.msra.mxu0 0.0
      %92 = vmatprep.subr.mxu0 0.0
      %93 = vmatpush1.msra.mxu0 0.0
      %94 = vmatprep.subr.mxu0 0.0
      %95 = vmatpush1.msra.mxu0 0.0
      %96 = vmatprep.subr.mxu0 0.0
      %97 = vmatpush1.msra.mxu0 0.0
      %98 = vmatprep.subr.mxu0 0.0
      %99 = vmatpush1.msra.mxu0 0.0
      %100 = vmatprep.subr.mxu0 0.0
      %101 = vmatpush1.msra.mxu0 0.0
      %102 = vmatprep.subr.mxu0 0.0
      %103 = vmatpush1.msra.mxu0 0.0
      %104 = vmatprep.mubr.f32.mxu0 0.0
      %105 = vmatmul.mubr.f32.gmra.mrb[0].mxu0 %v34
      %v106 = vpop.f32.mrb[0].mxu0
      %v107 = vadd.f32 0.0, %v106
      %v108 = vpop.f32.mrb[0].mxu0
      %109 = vdwg.mxu0
      %v110 = vmul.f32 %v107, 0.35355338
      %111 = vst.msk [vmem:[#allocation2] sm:$0xff] %vm29, %v110
    $region17: #{tpu_custom_call.1} parent=1 // pred_fallthru
      _
    %v112 = vld [vmem:[%s1] sm:$0xff]
    %114 = vrot.lane.b32.xlu0 %v15, 96
    %v115 = vpop.permute.xlu0 %114
    %vm116 = vcmask 31744
    %v118 = vsel %vm116, %v112, 0
    %vm120 = vcmask 1043456
    %v121 = vsel %vm120, %v115, 0
    %123 = vmatprep.subr.mxu0 0.0
    %124 = vmatpush1.msra.mxu0 %v121
    %125 = vmatprep.subr.mxu0 0.0
    %126 = vmatpush1.msra.mxu0 0.0
    %127 = vmatprep.subr.mxu0 0.0
    %128 = vmatpush1.msra.mxu0 0.0
    %129 = vmatprep.subr.mxu0 0.0
    %130 = vmatpush1.msra.mxu0 0.0
    %131 = vmatprep.subr.mxu0 0.0
    %132 = vmatpush1.msra.mxu0 0.0
    %133 = vmatprep.subr.mxu0 0.0
    %134 = vmatpush1.msra.mxu0 0.0
    %135 = vmatprep.subr.mxu0 0.0
    %136 = vmatpush1.msra.mxu0 0.0
    %137 = vmatprep.subr.mxu0 0.0
    %138 = vmatpush1.msra.mxu0 0.0
    %139 = vmatprep.subr.mxu0 0.0
    %140 = vmatpush1.msra.mxu0 0.0
    %141 = vmatprep.subr.mxu0 0.0
    %142 = vmatpush1.msra.mxu0 0.0
    %143 = vmatprep.subr.mxu0 0.0
    %144 = vmatpush1.msra.mxu0 0.0
    %145 = vmatprep.subr.mxu0 0.0
    %146 = vmatpush1.msra.mxu0 0.0
    %147 = vmatprep.subr.mxu0 0.0
    %148 = vmatpush1.msra.mxu0 0.0
    %149 = vmatprep.subr.mxu0 0.0
    %150 = vmatpush1.msra.mxu0 0.0
    %151 = vmatprep.subr.mxu0 0.0
    %152 = vmatpush1.msra.mxu0 0.0
    %153 = vmatprep.subr.mxu0 0.0
    %154 = vmatpush1.msra.mxu0 0.0
    %155 = vmatprep.subr.mxu0 0.0
    %156 = vmatpush1.msra.mxu0 0.0
    %157 = vmatprep.subr.mxu0 0.0
    %158 = vmatpush1.msra.mxu0 0.0
    %159 = vmatprep.subr.mxu0 0.0
    %160 = vmatpush1.msra.mxu0 0.0
    %161 = vmatprep.subr.mxu0 0.0
    %162 = vmatpush1.msra.mxu0 0.0
    %163 = vmatprep.subr.mxu0 0.0
    %164 = vmatpush1.msra.mxu0 0.0
    %165 = vmatprep.subr.mxu0 0.0
    %166 = vmatpush1.msra.mxu0 0.0
    %167 = vmatprep.subr.mxu0 0.0
    %168 = vmatpush1.msra.mxu0 0.0
    %169 = vmatprep.subr.mxu0 0.0
    %170 = vmatpush1.msra.mxu0 0.0
    %171 = vmatprep.subr.mxu0 0.0
    %172 = vmatpush1.msra.mxu0 0.0
    %173 = vmatprep.subr.mxu0 0.0
    %174 = vmatpush1.msra.mxu0 0.0
    %175 = vmatprep.subr.mxu0 0.0
    %176 = vmatpush1.msra.mxu0 0.0
    %177 = vmatprep.subr.mxu0 0.0
    %178 = vmatpush1.msra.mxu0 0.0
    %179 = vmatprep.subr.mxu0 0.0
    %180 = vmatpush1.msra.mxu0 0.0
    %181 = vmatprep.subr.mxu0 0.0
    %182 = vmatpush1.msra.mxu0 0.0
    %183 = vmatprep.subr.mxu0 0.0
    %184 = vmatpush1.msra.mxu0 0.0
    %185 = vmatprep.subr.mxu0 0.0
    %186 = vmatpush1.msra.mxu0 0.0
    %187 = vmatprep.mubr.f32.mxu0 0.0
    %188 = vmatmul.mubr.f32.gmra.mrb[0].mxu0 %v118
    %v189 = vpop.f32.mrb[0].mxu0
    %v190 = vadd.f32 0.0, %v189
    %v191 = vpop.f32.mrb[0].mxu0
    %192 = vdwg.mxu0
    %v193 = vld [vmem:[#allocation2] sm:$0xff]
    %vm194 = vcmask 64512
    %v196 = vsel %vm194, %v193, 0
    %v199 = vsel %vm194, %v190, 0
    %201 = vmatprep.subr.mxu0 0.0
    %202 = vmatpush1.xpose.msra.mxu0 %v199
    %203 = vmatprep.subr.mxu0 0.0
    %204 = vmatpush1.xpose.msra.mxu0 0.0
    %205 = vmatprep.subr.mxu0 0.0
    %206 = vmatpush1.xpose.msra.mxu0 0.0
    %207 = vmatprep.subr.mxu0 0.0
    %208 = vmatpush1.xpose.msra.mxu0 0.0
    %209 = vmatprep.subr.mxu0 0.0
    %210 = vmatpush1.xpose.msra.mxu0 0.0
    %211 = vmatprep.subr.mxu0 0.0
    %212 = vmatpush1.xpose.msra.mxu0 0.0
    %213 = vmatprep.subr.mxu0 0.0
    %214 = vmatpush1.xpose.msra.mxu0 0.0
    %215 = vmatprep.subr.mxu0 0.0
    %216 = vmatpush1.xpose.msra.mxu0 0.0
    %217 = vmatprep.subr.mxu0 0.0
    %218 = vmatpush1.xpose.msra.mxu0 0.0
    %219 = vmatprep.subr.mxu0 0.0
    %220 = vmatpush1.xpose.msra.mxu0 0.0
    %221 = vmatprep.subr.mxu0 0.0
    %222 = vmatpush1.xpose.msra.mxu0 0.0
    %223 = vmatprep.subr.mxu0 0.0
    %224 = vmatpush1.xpose.msra.mxu0 0.0
    %225 = vmatprep.subr.mxu0 0.0
    %226 = vmatpush1.xpose.msra.mxu0 0.0
    %227 = vmatprep.subr.mxu0 0.0
    %228 = vmatpush1.xpose.msra.mxu0 0.0
    %229 = vmatprep.subr.mxu0 0.0
    %230 = vmatpush1.xpose.msra.mxu0 0.0
    %231 = vmatprep.subr.mxu0 0.0
    %232 = vmatpush1.xpose.msra.mxu0 0.0
    %233 = vmatprep.subr.mxu0 0.0
    %234 = vmatpush1.xpose.msra.mxu0 0.0
    %235 = vmatprep.subr.mxu0 0.0
    %236 = vmatpush1.xpose.msra.mxu0 0.0
    %237 = vmatprep.subr.mxu0 0.0
    %238 = vmatpush1.xpose.msra.mxu0 0.0
    %239 = vmatprep.subr.mxu0 0.0
    %240 = vmatpush1.xpose.msra.mxu0 0.0
    %241 = vmatprep.subr.mxu0 0.0
    %242 = vmatpush1.xpose.msra.mxu0 0.0
    %243 = vmatprep.subr.mxu0 0.0
    %244 = vmatpush1.xpose.msra.mxu0 0.0
    %245 = vmatprep.subr.mxu0 0.0
    %246 = vmatpush1.xpose.msra.mxu0 0.0
    %247 = vmatprep.subr.mxu0 0.0
    %248 = vmatpush1.xpose.msra.mxu0 0.0
    %249 = vmatprep.subr.mxu0 0.0
    %250 = vmatpush1.xpose.msra.mxu0 0.0
    %251 = vmatprep.subr.mxu0 0.0
    %252 = vmatpush1.xpose.msra.mxu0 0.0
    %253 = vmatprep.subr.mxu0 0.0
    %254 = vmatpush1.xpose.msra.mxu0 0.0
    %255 = vmatprep.subr.mxu0 0.0
    %256 = vmatpush1.xpose.msra.mxu0 0.0
    %257 = vmatprep.subr.mxu0 0.0
    %258 = vmatpush1.xpose.msra.mxu0 0.0
    %259 = vmatprep.subr.mxu0 0.0
    %260 = vmatpush1.xpose.msra.mxu0 0.0
    %261 = vmatprep.subr.mxu0 0.0
    %262 = vmatpush1.xpose.msra.mxu0 0.0
    %263 = vmatprep.subr.mxu0 0.0
    %264 = vmatpush1.xpose.msra.mxu0 0.0
    %265 = vmatprep.mubr.f32.mxu0 0.0
    %266 = vmatmul.mubr.f32.gmra.mrb[0].mxu0 %v196
    %v267 = vpop.f32.mrb[0].mxu0
    %v268 = vadd.f32 0.0, %v267
    %v269 = vpop.f32.mrb[0].mxu0
    %270 = vdwg.mxu0
    %v271 = vld [vmem:[#allocation3] sm:$0xff]
    %v272 = vsel %vm194, %v268, -inf
    %273 = vmax.xlane.f32.xlu0 %v272
    %v274 = vpop.xlane.xlu0 %273
    %v275 = vmax.f32 %v271, %v274
    %v276 = vsub.f32 %v271, %v275
    %v277 = vmul.f32 %v276, 1.442695
    %v278 = vpow.pop %v277
    %280 = vset.pattern.permute.xlu0 0
    %281 = vperm.xlu0 %280, %v275
    %v282 = vpop.permute.xlu0 %281
    %v284 = vsub.f32 %v268, %v282
    %v285 = vmul.f32 %v284, 1.442695
    %v286 = vpow.pop %v285
    %v287 = vld [vmem:[#allocation4] sm:$0xff]
    %v288 = vmul.f32 %v278, %v287
    %v289 = vsel %vm194, %v286, 0.0
    %290 = vadd.xlane.f32.xlu0 %v289
    %v291 = vpop.xlane.xlu0 %290
    %v292 = vadd.f32 %v288, %v291
    %vm293 = vcmask 7168
    %294 = vst.msk [vmem:[#allocation4] sm:$0xff] %vm293, %v292
    %295 = vst.msk [vmem:[#allocation3] sm:$0xff] %vm293, %v275
    %v296 = vld [vmem:[#allocation5] sm:$0xff]
    %298 = vset.pattern.permute.xlu0 0
    %299 = vperm.xlu0 %298, %v278
    %v300 = vpop.permute.xlu0 %299
    %v302 = vmul.f32 %v300, %v296
    %303 = vrot.lane.b32.xlu0 %v190, 96
    %v304 = vpop.permute.xlu0 %303
    %v307 = vsel %vm194, %v286, 0
    %309 = vmatprep.subr.mxu0 0.0
    %310 = vmatpush1.msra.mxu0 %v304
    %311 = vmatprep.subr.mxu0 0.0
    %312 = vmatpush1.msra.mxu0 0.0
    %313 = vmatprep.subr.mxu0 0.0
    %314 = vmatpush1.msra.mxu0 0.0
    %315 = vmatprep.subr.mxu0 0.0
    %316 = vmatpush1.msra.mxu0 0.0
    %317 = vmatprep.subr.mxu0 0.0
    %318 = vmatpush1.msra.mxu0 0.0
    %319 = vmatprep.subr.mxu0 0.0
    %320 = vmatpush1.msra.mxu0 0.0
    %321 = vmatprep.subr.mxu0 0.0
    %322 = vmatpush1.msra.mxu0 0.0
    %323 = vmatprep.subr.mxu0 0.0
    %324 = vmatpush1.msra.mxu0 0.0
    %325 = vmatprep.subr.mxu0 0.0
    %326 = vmatpush1.msra.mxu0 0.0
    %327 = vmatprep.subr.mxu0 0.0
    %328 = vmatpush1.msra.mxu0 0.0
    %329 = vmatprep.subr.mxu0 0.0
    %330 = vmatpush1.msra.mxu0 0.0
    %331 = vmatprep.subr.mxu0 0.0
    %332 = vmatpush1.msra.mxu0 0.0
    %333 = vmatprep.subr.mxu0 0.0
    %334 = vmatpush1.msra.mxu0 0.0
    %335 = vmatprep.subr.mxu0 0.0
    %336 = vmatpush1.msra.mxu0 0.0
    %337 = vmatprep.subr.mxu0 0.0
    %338 = vmatpush1.msra.mxu0 0.0
    %339 = vmatprep.subr.mxu0 0.0
    %340 = vmatpush1.msra.mxu0 0.0
    %341 = vmatprep.subr.mxu0 0.0
    %342 = vmatpush1.msra.mxu0 0.0
    %343 = vmatprep.subr.mxu0 0.0
    %344 = vmatpush1.msra.mxu0 0.0
    %345 = vmatprep.subr.mxu0 0.0
    %346 = vmatpush1.msra.mxu0 0.0
    %347 = vmatprep.subr.mxu0 0.0
    %348 = vmatpush1.msra.mxu0 0.0
    %349 = vmatprep.subr.mxu0 0.0
    %350 = vmatpush1.msra.mxu0 0.0
    %351 = vmatprep.subr.mxu0 0.0
    %352 = vmatpush1.msra.mxu0 0.0
    %353 = vmatprep.subr.mxu0 0.0
    %354 = vmatpush1.msra.mxu0 0.0
    %355 = vmatprep.subr.mxu0 0.0
    %356 = vmatpush1.msra.mxu0 0.0
    %357 = vmatprep.subr.mxu0 0.0
    %358 = vmatpush1.msra.mxu0 0.0
    %359 = vmatprep.subr.mxu0 0.0
    %360 = vmatpush1.msra.mxu0 0.0
    %361 = vmatprep.subr.mxu0 0.0
    %362 = vmatpush1.msra.mxu0 0.0
    %363 = vmatprep.subr.mxu0 0.0
    %364 = vmatpush1.msra.mxu0 0.0
    %365 = vmatprep.subr.mxu0 0.0
    %366 = vmatpush1.msra.mxu0 0.0
    %367 = vmatprep.subr.mxu0 0.0
    %368 = vmatpush1.msra.mxu0 0.0
    %369 = vmatprep.subr.mxu0 0.0
    %370 = vmatpush1.msra.mxu0 0.0
    %371 = vmatprep.subr.mxu0 0.0
    %372 = vmatpush1.msra.mxu0 0.0
    %373 = vmatprep.mubr.f32.mxu0 0.0
    %374 = vmatmul.mubr.f32.gmra.mrb[0].mxu0 %v307
    %v375 = vpop.f32.mrb[0].mxu0
    %v376 = vadd.f32 0.0, %v375
    %v377 = vpop.f32.mrb[0].mxu0
    %378 = vdwg.mxu0
    %v379 = vadd.f32 %v302, %v376
    %380 = vst.msk [vmem:[#allocation5] sm:$0xff] %vm194, %v379
    %v381 = vld [vmem:[#allocation2] sm:$0xff]
    %383 = vrot.lane.b32.xlu0 %v381, 120
    %v384 = vpop.permute.xlu0 %383
    %385 = vrot.lane.b32.xlu0 %v190, 120
    %v386 = vpop.permute.xlu0 %385
    %v387 = vsel %vm194, %v384, 0
    %v389 = vsel %vm194, %v386, 0
    %391 = vmatprep.subr.mxu0 0.0
    %392 = vmatpush1.xpose.msra.mxu0 %v389
    %393 = vmatprep.subr.mxu0 0.0
    %394 = vmatpush1.xpose.msra.mxu0 0.0
    %395 = vmatprep.subr.mxu0 0.0
    %396 = vmatpush1.xpose.msra.mxu0 0.0
    %397 = vmatprep.subr.mxu0 0.0
    %398 = vmatpush1.xpose.msra.mxu0 0.0
    %399 = vmatprep.subr.mxu0 0.0
    %400 = vmatpush1.xpose.msra.mxu0 0.0
    %401 = vmatprep.subr.mxu0 0.0
    %402 = vmatpush1.xpose.msra.mxu0 0.0
    %403 = vmatprep.subr.mxu0 0.0
    %404 = vmatpush1.xpose.msra.mxu0 0.0
    %405 = vmatprep.subr.mxu0 0.0
    %406 = vmatpush1.xpose.msra.mxu0 0.0
    %407 = vmatprep.subr.mxu0 0.0
    %408 = vmatpush1.xpose.msra.mxu0 0.0
    %409 = vmatprep.subr.mxu0 0.0
    %410 = vmatpush1.xpose.msra.mxu0 0.0
    %411 = vmatprep.subr.mxu0 0.0
    %412 = vmatpush1.xpose.msra.mxu0 0.0
    %413 = vmatprep.subr.mxu0 0.0
    %414 = vmatpush1.xpose.msra.mxu0 0.0
    %415 = vmatprep.subr.mxu0 0.0
    %416 = vmatpush1.xpose.msra.mxu0 0.0
    %417 = vmatprep.subr.mxu0 0.0
    %418 = vmatpush1.xpose.msra.mxu0 0.0
    %419 = vmatprep.subr.mxu0 0.0
    %420 = vmatpush1.xpose.msra.mxu0 0.0
    %421 = vmatprep.subr.mxu0 0.0
    %422 = vmatpush1.xpose.msra.mxu0 0.0
    %423 = vmatprep.subr.mxu0 0.0
    %424 = vmatpush1.xpose.msra.mxu0 0.0
    %425 = vmatprep.subr.mxu0 0.0
    %426 = vmatpush1.xpose.msra.mxu0 0.0
    %427 = vmatprep.subr.mxu0 0.0
    %428 = vmatpush1.xpose.msra.mxu0 0.0
    %429 = vmatprep.subr.mxu0 0.0
    %430 = vmatpush1.xpose.msra.mxu0 0.0
    %431 = vmatprep.subr.mxu0 0.0
    %432 = vmatpush1.xpose.msra.mxu0 0.0
    %433 = vmatprep.subr.mxu0 0.0
    %434 = vmatpush1.xpose.msra.mxu0 0.0
    %435 = vmatprep.subr.mxu0 0.0
    %436 = vmatpush1.xpose.msra.mxu0 0.0
    %437 = vmatprep.subr.mxu0 0.0
    %438 = vmatpush1.xpose.msra.mxu0 0.0
    %439 = vmatprep.subr.mxu0 0.0
    %440 = vmatpush1.xpose.msra.mxu0 0.0
    %441 = vmatprep.subr.mxu0 0.0
    %442 = vmatpush1.xpose.msra.mxu0 0.0
    %443 = vmatprep.subr.mxu0 0.0
    %444 = vmatpush1.xpose.msra.mxu0 0.0
    %445 = vmatprep.subr.mxu0 0.0
    %446 = vmatpush1.xpose.msra.mxu0 0.0
    %447 = vmatprep.subr.mxu0 0.0
    %448 = vmatpush1.xpose.msra.mxu0 0.0
    %449 = vmatprep.subr.mxu0 0.0
    %450 = vmatpush1.xpose.msra.mxu0 0.0
    %451 = vmatprep.subr.mxu0 0.0
    %452 = vmatpush1.xpose.msra.mxu0 0.0
    %453 = vmatprep.subr.mxu0 0.0
    %454 = vmatpush1.xpose.msra.mxu0 0.0
    %455 = vmatprep.mubr.f32.mxu0 0.0
    %456 = vmatmul.mubr.f32.gmra.mrb[0].mxu0 %v387
    %v457 = vpop.f32.mrb[0].mxu0
    %v458 = vadd.f32 0.0, %v457
    %v459 = vpop.f32.mrb[0].mxu0
    %460 = vdwg.mxu0
    %s461 = scalar_lea.vmem [#allocation3], 8
    %v462 = vld [vmem:[%s461] sm:$0xff]
    %v463 = vsel %vm194, %v458, -inf
    %464 = vmax.xlane.f32.xlu0 %v463
    %v465 = vpop.xlane.xlu0 %464
    %v466 = vmax.f32 %v462, %v465
    %v467 = vsub.f32 %v462, %v466
    %v468 = vmul.f32 %v467, 1.442695
    %v469 = vpow.pop %v468
    %471 = vset.pattern.permute.xlu0 0
    %472 = vperm.xlu0 %471, %v466
    %v473 = vpop.permute.xlu0 %472
    %v475 = vsub.f32 %v458, %v473
    %v476 = vmul.f32 %v475, 1.442695
    %v477 = vpow.pop %v476
    %s478 = scalar_lea.vmem [#allocation4], 8
    %v479 = vld [vmem:[%s478] sm:$0xff]
    %v480 = vmul.f32 %v469, %v479
    %v481 = vsel %vm194, %v477, 0.0
    %482 = vadd.xlane.f32.xlu0 %v481
    %v483 = vpop.xlane.xlu0 %482
    %v484 = vadd.f32 %v480, %v483
    %485 = vst.msk [vmem:[%s478] sm:$0xff] %vm293, %v484
    %486 = vst.msk [vmem:[%s461] sm:$0xff] %vm293, %v466
    %v487 = vld [vmem:[#allocation5] sm:$0xff]
    %489 = vset.pattern.permute.xlu0 0
    %490 = vperm.xlu0 %489, %v469
    %v491 = vpop.permute.xlu0 %490
    %v493 = vmul.f32 %v491, %v487
    %494 = vrot.lane.b32.xlu0 %v190, 88
    %v495 = vpop.permute.xlu0 %494
    %v498 = vsel %vm194, %v477, 0
    %500 = vmatprep.subr.mxu0 0.0
    %501 = vmatpush1.msra.mxu0 %v495
    %502 = vmatprep.subr.mxu0 0.0
    %503 = vmatpush1.msra.mxu0 0.0
    %504 = vmatprep.subr.mxu0 0.0
    %505 = vmatpush1.msra.mxu0 0.0
    %506 = vmatprep.subr.mxu0 0.0
    %507 = vmatpush1.msra.mxu0 0.0
    %508 = vmatprep.subr.mxu0 0.0
    %509 = vmatpush1.msra.mxu0 0.0
    %510 = vmatprep.subr.mxu0 0.0
    %511 = vmatpush1.msra.mxu0 0.0
    %512 = vmatprep.subr.mxu0 0.0
    %513 = vmatpush1.msra.mxu0 0.0
    %514 = vmatprep.subr.mxu0 0.0
    %515 = vmatpush1.msra.mxu0 0.0
    %516 = vmatprep.subr.mxu0 0.0
    %517 = vmatpush1.msra.mxu0 0.0
    %518 = vmatprep.subr.mxu0 0.0
    %519 = vmatpush1.msra.mxu0 0.0
    %520 = vmatprep.subr.mxu0 0.0
    %521 = vmatpush1.msra.mxu0 0.0
    %522 = vmatprep.subr.mxu0 0.0
    %523 = vmatpush1.msra.mxu0 0.0
    %524 = vmatprep.subr.mxu0 0.0
    %525 = vmatpush1.msra.mxu0 0.0
    %526 = vmatprep.subr.mxu0 0.0
    %527 = vmatpush1.msra.mxu0 0.0
    %528 = vmatprep.subr.mxu0 0.0
    %529 = vmatpush1.msra.mxu0 0.0
    %530 = vmatprep.subr.mxu0 0.0
    %531 = vmatpush1.msra.mxu0 0.0
    %532 = vmatprep.subr.mxu0 0.0
    %533 = vmatpush1.msra.mxu0 0.0
    %534 = vmatprep.subr.mxu0 0.0
    %535 = vmatpush1.msra.mxu0 0.0
    %536 = vmatprep.subr.mxu0 0.0
    %537 = vmatpush1.msra.mxu0 0.0
    %538 = vmatprep.subr.mxu0 0.0
    %539 = vmatpush1.msra.mxu0 0.0
    %540 = vmatprep.subr.mxu0 0.0
    %541 = vmatpush1.msra.mxu0 0.0
    %542 = vmatprep.subr.mxu0 0.0
    %543 = vmatpush1.msra.mxu0 0.0
    %544 = vmatprep.subr.mxu0 0.0
    %545 = vmatpush1.msra.mxu0 0.0
    %546 = vmatprep.subr.mxu0 0.0
    %547 = vmatpush1.msra.mxu0 0.0
    %548 = vmatprep.subr.mxu0 0.0
    %549 = vmatpush1.msra.mxu0 0.0
    %550 = vmatprep.subr.mxu0 0.0
    %551 = vmatpush1.msra.mxu0 0.0
    %552 = vmatprep.subr.mxu0 0.0
    %553 = vmatpush1.msra.mxu0 0.0
    %554 = vmatprep.subr.mxu0 0.0
    %555 = vmatpush1.msra.mxu0 0.0
    %556 = vmatprep.subr.mxu0 0.0
    %557 = vmatpush1.msra.mxu0 0.0
    %558 = vmatprep.subr.mxu0 0.0
    %559 = vmatpush1.msra.mxu0 0.0
    %560 = vmatprep.subr.mxu0 0.0
    %561 = vmatpush1.msra.mxu0 0.0
    %562 = vmatprep.subr.mxu0 0.0
    %563 = vmatpush1.msra.mxu0 0.0
    %564 = vmatprep.mubr.f32.mxu0 0.0
    %565 = vmatmul.mubr.f32.gmra.mrb[0].mxu0 %v498
    %v566 = vpop.f32.mrb[0].mxu0
    %v567 = vadd.f32 0.0, %v566
    %v568 = vpop.f32.mrb[0].mxu0
    %569 = vdwg.mxu0
    %571 = vrot.lane.b32.xlu0 %v567, 8
    %v572 = vpop.permute.xlu0 %571
    %v574 = vadd.f32 %v493, %v572
    %vm575 = vcmask 130112
    %576 = vst.msk [vmem:[#allocation5] sm:$0xff] %vm575, %v574
    %v577 = vld [vmem:[#allocation2] sm:$0xff]
    %579 = vrot.lane.b32.xlu0 %v577, 112
    %v580 = vpop.permute.xlu0 %579
    %581 = vrot.lane.b32.xlu0 %v190, 112
    %v582 = vpop.permute.xlu0 %581
    %v583 = vsel %vm194, %v580, 0
    %v585 = vsel %vm194, %v582, 0
    %587 = vmatprep.subr.mxu0 0.0
    %588 = vmatpush1.xpose.msra.mxu0 %v585
    %589 = vmatprep.subr.mxu0 0.0
    %590 = vmatpush1.xpose.msra.mxu0 0.0
    %591 = vmatprep.subr.mxu0 0.0
    %592 = vmatpush1.xpose.msra.mxu0 0.0
    %593 = vmatprep.subr.mxu0 0.0
    %594 = vmatpush1.xpose.msra.mxu0 0.0
    %595 = vmatprep.subr.mxu0 0.0
    %596 = vmatpush1.xpose.msra.mxu0 0.0
    %597 = vmatprep.subr.mxu0 0.0
    %598 = vmatpush1.xpose.msra.mxu0 0.0
    %599 = vmatprep.subr.mxu0 0.0
    %600 = vmatpush1.xpose.msra.mxu0 0.0
    %601 = vmatprep.subr.mxu0 0.0
    %602 = vmatpush1.xpose.msra.mxu0 0.0
    %603 = vmatprep.subr.mxu0 0.0
    %604 = vmatpush1.xpose.msra.mxu0 0.0
    %605 = vmatprep.subr.mxu0 0.0
    %606 = vmatpush1.xpose.msra.mxu0 0.0
    %607 = vmatprep.subr.mxu0 0.0
    %608 = vmatpush1.xpose.msra.mxu0 0.0
    %609 = vmatprep.subr.mxu0 0.0
    %610 = vmatpush1.xpose.msra.mxu0 0.0
    %611 = vmatprep.subr.mxu0 0.0
    %612 = vmatpush1.xpose.msra.mxu0 0.0
    %613 = vmatprep.subr.mxu0 0.0
    %614 = vmatpush1.xpose.msra.mxu0 0.0
    %615 = vmatprep.subr.mxu0 0.0
    %616 = vmatpush1.xpose.msra.mxu0 0.0
    %617 = vmatprep.subr.mxu0 0.0
    %618 = vmatpush1.xpose.msra.mxu0 0.0
    %619 = vmatprep.subr.mxu0 0.0
    %620 = vmatpush1.xpose.msra.mxu0 0.0
    %621 = vmatprep.subr.mxu0 0.0
    %622 = vmatpush1.xpose.msra.mxu0 0.0
    %623 = vmatprep.subr.mxu0 0.0
    %624 = vmatpush1.xpose.msra.mxu0 0.0
    %625 = vmatprep.subr.mxu0 0.0
    %626 = vmatpush1.xpose.msra.mxu0 0.0
    %627 = vmatprep.subr.mxu0 0.0
    %628 = vmatpush1.xpose.msra.mxu0 0.0
    %629 = vmatprep.subr.mxu0 0.0
    %630 = vmatpush1.xpose.msra.mxu0 0.0
    %631 = vmatprep.subr.mxu0 0.0
    %632 = vmatpush1.xpose.msra.mxu0 0.0
    %633 = vmatprep.subr.mxu0 0.0
    %634 = vmatpush1.xpose.msra.mxu0 0.0
    %635 = vmatprep.subr.mxu0 0.0
    %636 = vmatpush1.xpose.msra.mxu0 0.0
    %637 = vmatprep.subr.mxu0 0.0
    %638 = vmatpush1.xpose.msra.mxu0 0.0
    %639 = vmatprep.subr.mxu0 0.0
    %640 = vmatpush1.xpose.msra.mxu0 0.0
    %641 = vmatprep.subr.mxu0 0.0
    %642 = vmatpush1.xpose.msra.mxu0 0.0
    %643 = vmatprep.subr.mxu0 0.0
    %644 = vmatpush1.xpose.msra.mxu0 0.0
    %645 = vmatprep.subr.mxu0 0.0
    %646 = vmatpush1.xpose.msra.mxu0 0.0
    %647 = vmatprep.subr.mxu0 0.0
    %648 = vmatpush1.xpose.msra.mxu0 0.0
    %649 = vmatprep.subr.mxu0 0.0
    %650 = vmatpush1.xpose.msra.mxu0 0.0
    %651 = vmatprep.mubr.f32.mxu0 0.0
    %652 = vmatmul.mubr.f32.gmra.mrb[0].mxu0 %v583
    %v653 = vpop.f32.mrb[0].mxu0
    %v654 = vadd.f32 0.0, %v653
    %v655 = vpop.f32.mrb[0].mxu0
    %656 = vdwg.mxu0
    %s657 = scalar_lea.vmem [#allocation3], 16
    %v658 = vld [vmem:[%s657] sm:$0xff]
    %v659 = vsel %vm194, %v654, -inf
    %660 = vmax.xlane.f32.xlu0 %v659
    %v661 = vpop.xlane.xlu0 %660
    %v662 = vmax.f32 %v658, %v661
    %v663 = vsub.f32 %v658, %v662
    %v664 = vmul.f32 %v663, 1.442695
    %v665 = vpow.pop %v664
    %667 = vset.pattern.permute.xlu0 0
    %668 = vperm.xlu0 %667, %v662
    %v669 = vpop.permute.xlu0 %668
    %v671 = vsub.f32 %v654, %v669
    %v672 = vmul.f32 %v671, 1.442695
    %v673 = vpow.pop %v672
    %s674 = scalar_lea.vmem [#allocation4], 16
    %v675 = vld [vmem:[%s674] sm:$0xff]
    %v676 = vmul.f32 %v665, %v675
    %v677 = vsel %vm194, %v673, 0.0
    %678 = vadd.xlane.f32.xlu0 %v677
    %v679 = vpop.xlane.xlu0 %678
    %v680 = vadd.f32 %v676, %v679
    %681 = vst.msk [vmem:[%s674] sm:$0xff] %vm293, %v680
    %682 = vst.msk [vmem:[%s657] sm:$0xff] %vm293, %v662
    %v683 = vld [vmem:[#allocation5] sm:$0xff]
    %685 = vset.pattern.permute.xlu0 0
    %686 = vperm.xlu0 %685, %v665
    %v687 = vpop.permute.xlu0 %686
    %v689 = vmul.f32 %v687, %v683
    %690 = vrot.lane.b32.xlu0 %v190, 80
    %v691 = vpop.permute.xlu0 %690
    %v694 = vsel %vm194, %v673, 0
    %696 = vmatprep.subr.mxu0 0.0
    %697 = vmatpush1.msra.mxu0 %v691
    %698 = vmatprep.subr.mxu0 0.0
    %699 = vmatpush1.msra.mxu0 0.0
    %700 = vmatprep.subr.mxu0 0.0
    %701 = vmatpush1.msra.mxu0 0.0
    %702 = vmatprep.subr.mxu0 0.0
    %703 = vmatpush1.msra.mxu0 0.0
    %704 = vmatprep.subr.mxu0 0.0
    %705 = vmatpush1.msra.mxu0 0.0
    %706 = vmatprep.subr.mxu0 0.0
    %707 = vmatpush1.msra.mxu0 0.0
    %708 = vmatprep.subr.mxu0 0.0
    %709 = vmatpush1.msra.mxu0 0.0
    %710 = vmatprep.subr.mxu0 0.0
    %711 = vmatpush1.msra.mxu0 0.0
    %712 = vmatprep.subr.mxu0 0.0
    %713 = vmatpush1.msra.mxu0 0.0
    %714 = vmatprep.subr.mxu0 0.0
    %715 = vmatpush1.msra.mxu0 0.0
    %716 = vmatprep.subr.mxu0 0.0
    %717 = vmatpush1.msra.mxu0 0.0
    %718 = vmatprep.subr.mxu0 0.0
    %719 = vmatpush1.msra.mxu0 0.0
    %720 = vmatprep.subr.mxu0 0.0
    %721 = vmatpush1.msra.mxu0 0.0
    %722 = vmatprep.subr.mxu0 0.0
    %723 = vmatpush1.msra.mxu0 0.0
    %724 = vmatprep.subr.mxu0 0.0
    %725 = vmatpush1.msra.mxu0 0.0
    %726 = vmatprep.subr.mxu0 0.0
    %727 = vmatpush1.msra.mxu0 0.0
    %728 = vmatprep.subr.mxu0 0.0
    %729 = vmatpush1.msra.mxu0 0.0
    %730 = vmatprep.subr.mxu0 0.0
    %731 = vmatpush1.msra.mxu0 0.0
    %732 = vmatprep.subr.mxu0 0.0
    %733 = vmatpush1.msra.mxu0 0.0
    %734 = vmatprep.subr.mxu0 0.0
    %735 = vmatpush1.msra.mxu0 0.0
    %736 = vmatprep.subr.mxu0 0.0
    %737 = vmatpush1.msra.mxu0 0.0
    %738 = vmatprep.subr.mxu0 0.0
    %739 = vmatpush1.msra.mxu0 0.0
    %740 = vmatprep.subr.mxu0 0.0
    %741 = vmatpush1.msra.mxu0 0.0
    %742 = vmatprep.subr.mxu0 0.0
    %743 = vmatpush1.msra.mxu0 0.0
    %744 = vmatprep.subr.mxu0 0.0
    %745 = vmatpush1.msra.mxu0 0.0
    %746 = vmatprep.subr.mxu0 0.0
    %747 = vmatpush1.msra.mxu0 0.0
    %748 = vmatprep.subr.mxu0 0.0
    %749 = vmatpush1.msra.mxu0 0.0
    %750 = vmatprep.subr.mxu0 0.0
    %751 = vmatpush1.msra.mxu0 0.0
    %752 = vmatprep.subr.mxu0 0.0
    %753 = vmatpush1.msra.mxu0 0.0
    %754 = vmatprep.subr.mxu0 0.0
    %755 = vmatpush1.msra.mxu0 0.0
    %756 = vmatprep.subr.mxu0 0.0
    %757 = vmatpush1.msra.mxu0 0.0
    %758 = vmatprep.subr.mxu0 0.0
    %759 = vmatpush1.msra.mxu0 0.0
    %760 = vmatprep.mubr.f32.mxu0 0.0
    %761 = vmatmul.mubr.f32.gmra.mrb[0].mxu0 %v694
    %v762 = vpop.f32.mrb[0].mxu0
    %v763 = vadd.f32 0.0, %v762
    %v764 = vpop.f32.mrb[0].mxu0
    %765 = vdwg.mxu0
    %767 = vrot.lane.b32.xlu0 %v763, 16
    %v768 = vpop.permute.xlu0 %767
    %v770 = vadd.f32 %v689, %v768
    %vm771 = vcmask 195712
    %772 = vst.msk [vmem:[#allocation5] sm:$0xff] %vm771, %v770
    %v773 = vld [vmem:[#allocation2] sm:$0xff]
    %775 = vrot.lane.b32.xlu0 %v773, 104
    %v776 = vpop.permute.xlu0 %775
    %777 = vrot.lane.b32.xlu0 %v190, 104
    %v778 = vpop.permute.xlu0 %777
    %v779 = vsel %vm194, %v776, 0
    %v781 = vsel %vm194, %v778, 0
    %783 = vmatprep.subr.mxu0 0.0
    %784 = vmatpush1.xpose.msra.mxu0 %v781
    %785 = vmatprep.subr.mxu0 0.0
    %786 = vmatpush1.xpose.msra.mxu0 0.0
    %787 = vmatprep.subr.mxu0 0.0
    %788 = vmatpush1.xpose.msra.mxu0 0.0
    %789 = vmatprep.subr.mxu0 0.0
    %790 = vmatpush1.xpose.msra.mxu0 0.0
    %791 = vmatprep.subr.mxu0 0.0
    %792 = vmatpush1.xpose.msra.mxu0 0.0
    %793 = vmatprep.subr.mxu0 0.0
    %794 = vmatpush1.xpose.msra.mxu0 0.0
    %795 = vmatprep.subr.mxu0 0.0
    %796 = vmatpush1.xpose.msra.mxu0 0.0
    %797 = vmatprep.subr.mxu0 0.0
    %798 = vmatpush1.xpose.msra.mxu0 0.0
    %799 = vmatprep.subr.mxu0 0.0
    %800 = vmatpush1.xpose.msra.mxu0 0.0
    %801 = vmatprep.subr.mxu0 0.0
    %802 = vmatpush1.xpose.msra.mxu0 0.0
    %803 = vmatprep.subr.mxu0 0.0
    %804 = vmatpush1.xpose.msra.mxu0 0.0
    %805 = vmatprep.subr.mxu0 0.0
    %806 = vmatpush1.xpose.msra.mxu0 0.0
    %807 = vmatprep.subr.mxu0 0.0
    %808 = vmatpush1.xpose.msra.mxu0 0.0
    %809 = vmatprep.subr.mxu0 0.0
    %810 = vmatpush1.xpose.msra.mxu0 0.0
    %811 = vmatprep.subr.mxu0 0.0
    %812 = vmatpush1.xpose.msra.mxu0 0.0
    %813 = vmatprep.subr.mxu0 0.0
    %814 = vmatpush1.xpose.msra.mxu0 0.0
    %815 = vmatprep.subr.mxu0 0.0
    %816 = vmatpush1.xpose.msra.mxu0 0.0
    %817 = vmatprep.subr.mxu0 0.0
    %818 = vmatpush1.xpose.msra.mxu0 0.0
    %819 = vmatprep.subr.mxu0 0.0
    %820 = vmatpush1.xpose.msra.mxu0 0.0
    %821 = vmatprep.subr.mxu0 0.0
    %822 = vmatpush1.xpose.msra.mxu0 0.0
    %823 = vmatprep.subr.mxu0 0.0
    %824 = vmatpush1.xpose.msra.mxu0 0.0
    %825 = vmatprep.subr.mxu0 0.0
    %826 = vmatpush1.xpose.msra.mxu0 0.0
    %827 = vmatprep.subr.mxu0 0.0
    %828 = vmatpush1.xpose.msra.mxu0 0.0
    %829 = vmatprep.subr.mxu0 0.0
    %830 = vmatpush1.xpose.msra.mxu0 0.0
    %831 = vmatprep.subr.mxu0 0.0
    %832 = vmatpush1.xpose.msra.mxu0 0.0
    %833 = vmatprep.subr.mxu0 0.0
    %834 = vmatpush1.xpose.msra.mxu0 0.0
    %835 = vmatprep.subr.mxu0 0.0
    %836 = vmatpush1.xpose.msra.mxu0 0.0
    %837 = vmatprep.subr.mxu0 0.0
    %838 = vmatpush1.xpose.msra.mxu0 0.0
    %839 = vmatprep.subr.mxu0 0.0
    %840 = vmatpush1.xpose.msra.mxu0 0.0
    %841 = vmatprep.subr.mxu0 0.0
    %842 = vmatpush1.xpose.msra.mxu0 0.0
    %843 = vmatprep.subr.mxu0 0.0
    %844 = vmatpush1.xpose.msra.mxu0 0.0
    %845 = vmatprep.subr.mxu0 0.0
    %846 = vmatpush1.xpose.msra.mxu0 0.0
    %847 = vmatprep.mubr.f32.mxu0 0.0
    %848 = vmatmul.mubr.f32.gmra.mrb[0].mxu0 %v779
    %v849 = vpop.f32.mrb[0].mxu0
    %v850 = vadd.f32 0.0, %v849
    %v851 = vpop.f32.mrb[0].mxu0
    %852 = vdwg.mxu0
    %s853 = scalar_lea.vmem [#allocation3], 24
    %v854 = vld [vmem:[%s853] sm:$0xff]
    %v855 = vsel %vm194, %v850, -inf
    %856 = vmax.xlane.f32.xlu0 %v855
    %v857 = vpop.xlane.xlu0 %856
    %v858 = vmax.f32 %v854, %v857
    %v859 = vsub.f32 %v854, %v858
    %v860 = vmul.f32 %v859, 1.442695
    %v861 = vpow.pop %v860
    %863 = vset.pattern.permute.xlu0 0
    %864 = vperm.xlu0 %863, %v858
    %v865 = vpop.permute.xlu0 %864
    %v867 = vsub.f32 %v850, %v865
    %v868 = vmul.f32 %v867, 1.442695
    %v869 = vpow.pop %v868
    %s870 = scalar_lea.vmem [#allocation4], 24
    %v871 = vld [vmem:[%s870] sm:$0xff]
    %v872 = vmul.f32 %v861, %v871
    %v873 = vsel %vm194, %v869, 0.0
    %874 = vadd.xlane.f32.xlu0 %v873
    %v875 = vpop.xlane.xlu0 %874
    %v876 = vadd.f32 %v872, %v875
    %877 = vst.msk [vmem:[%s870] sm:$0xff] %vm293, %v876
    %878 = vst.msk [vmem:[%s853] sm:$0xff] %vm293, %v858
    %v879 = vld [vmem:[#allocation5] sm:$0xff]
    %881 = vset.pattern.permute.xlu0 0
    %882 = vperm.xlu0 %881, %v861
    %v883 = vpop.permute.xlu0 %882
    %v885 = vmul.f32 %v883, %v879
    %886 = vrot.lane.b32.xlu0 %v190, 72
    %v887 = vpop.permute.xlu0 %886
    %v890 = vsel %vm194, %v869, 0
    %892 = vmatprep.subr.mxu0 0.0
    %893 = vmatpush1.msra.mxu0 %v887
    %894 = vmatprep.subr.mxu0 0.0
    %895 = vmatpush1.msra.mxu0 0.0
    %896 = vmatprep.subr.mxu0 0.0
    %897 = vmatpush1.msra.mxu0 0.0
    %898 = vmatprep.subr.mxu0 0.0
    %899 = vmatpush1.msra.mxu0 0.0
    %900 = vmatprep.subr.mxu0 0.0
    %901 = vmatpush1.msra.mxu0 0.0
    %902 = vmatprep.subr.mxu0 0.0
    %903 = vmatpush1.msra.mxu0 0.0
    %904 = vmatprep.subr.mxu0 0.0
    %905 = vmatpush1.msra.mxu0 0.0
    %906 = vmatprep.subr.mxu0 0.0
    %907 = vmatpush1.msra.mxu0 0.0
    %908 = vmatprep.subr.mxu0 0.0
    %909 = vmatpush1.msra.mxu0 0.0
    %910 = vmatprep.subr.mxu0 0.0
    %911 = vmatpush1.msra.mxu0 0.0
    %912 = vmatprep.subr.mxu0 0.0
    %913 = vmatpush1.msra.mxu0 0.0
    %914 = vmatprep.subr.mxu0 0.0
    %915 = vmatpush1.msra.mxu0 0.0
    %916 = vmatprep.subr.mxu0 0.0
    %917 = vmatpush1.msra.mxu0 0.0
    %918 = vmatprep.subr.mxu0 0.0
    %919 = vmatpush1.msra.mxu0 0.0
    %920 = vmatprep.subr.mxu0 0.0
    %921 = vmatpush1.msra.mxu0 0.0
    %922 = vmatprep.subr.mxu0 0.0
    %923 = vmatpush1.msra.mxu0 0.0
    %924 = vmatprep.subr.mxu0 0.0
    %925 = vmatpush1.msra.mxu0 0.0
    %926 = vmatprep.subr.mxu0 0.0
    %927 = vmatpush1.msra.mxu0 0.0
    %928 = vmatprep.subr.mxu0 0.0
    %929 = vmatpush1.msra.mxu0 0.0
    %930 = vmatprep.subr.mxu0 0.0
    %931 = vmatpush1.msra.mxu0 0.0
    %932 = vmatprep.subr.mxu0 0.0
    %933 = vmatpush1.msra.mxu0 0.0
    %934 = vmatprep.subr.mxu0 0.0
    %935 = vmatpush1.msra.mxu0 0.0
    %936 = vmatprep.subr.mxu0 0.0
    %937 = vmatpush1.msra.mxu0 0.0
    %938 = vmatprep.subr.mxu0 0.0
    %939 = vmatpush1.msra.mxu0 0.0
    %940 = vmatprep.subr.mxu0 0.0
    %941 = vmatpush1.msra.mxu0 0.0
    %942 = vmatprep.subr.mxu0 0.0
    %943 = vmatpush1.msra.mxu0 0.0
    %944 = vmatprep.subr.mxu0 0.0
    %945 = vmatpush1.msra.mxu0 0.0
    %946 = vmatprep.subr.mxu0 0.0
    %947 = vmatpush1.msra.mxu0 0.0
    %948 = vmatprep.subr.mxu0 0.0
    %949 = vmatpush1.msra.mxu0 0.0
    %950 = vmatprep.subr.mxu0 0.0
    %951 = vmatpush1.msra.mxu0 0.0
    %952 = vmatprep.subr.mxu0 0.0
    %953 = vmatpush1.msra.mxu0 0.0
    %954 = vmatprep.subr.mxu0 0.0
    %955 = vmatpush1.msra.mxu0 0.0
    %956 = vmatprep.mubr.f32.mxu0 0.0
    %957 = vmatmul.mubr.f32.gmra.mrb[0].mxu0 %v890
    %v958 = vpop.f32.mrb[0].mxu0
    %v959 = vadd.f32 0.0, %v958
    %v960 = vpop.f32.mrb[0].mxu0
    %961 = vdwg.mxu0
    %963 = vrot.lane.b32.xlu0 %v959, 24
    %v964 = vpop.permute.xlu0 %963
    %v966 = vadd.f32 %v885, %v964
    %vm967 = vcmask 261312
    %968 = vst.msk [vmem:[#allocation5] sm:$0xff] %vm967, %v966
    // Predicated region
    $region18: #{tpu_custom_call.1} parent=1 // pred_check
      %p969 = pneg %p16
    $region19: #{tpu_custom_call.1} parent=1 // pred_check_branch
      %971 = sbr.rel (%p969) target = $region21
    $region20: #{tpu_custom_call.1} parent=1 // pred_region
      %v972 = vld [vmem:[#allocation5] sm:$0xff]
      %v973 = vld [vmem:[#allocation4] sm:$0xff]
      %v974 = vrcp.pop %v973
      %976 = vset.pattern.permute.xlu0 0
      %977 = vperm.xlu0 %976, %v974
      %v978 = vpop.permute.xlu0 %977
      %v980 = vmul.f32 %v972, %v978
      %981 = vst.msk [vmem:[#allocation5] sm:$0xff] %vm194, %v980
      %v982 = vld [vmem:[#allocation5] sm:$0xff]
      %v983 = vld [vmem:[%s478] sm:$0xff]
      %v984 = vrcp.pop %v983
      %986 = vset.pattern.permute.xlu0 0
      %987 = vperm.xlu0 %986, %v984
      %v988 = vpop.permute.xlu0 %987
      %v990 = vmul.f32 %v982, %v988
      %991 = vst.msk [vmem:[#allocation5] sm:$0xff] %vm575, %v990
      %v992 = vld [vmem:[#allocation5] sm:$0xff]
      %v993 = vld [vmem:[%s674] sm:$0xff]
      %v994 = vrcp.pop %v993
      %996 = vset.pattern.permute.xlu0 0
      %997 = vperm.xlu0 %996, %v994
      %v998 = vpop.permute.xlu0 %997
      %v1000 = vmul.f32 %v992, %v998
      %1001 = vst.msk [vmem:[#allocation5] sm:$0xff] %vm771, %v1000
      %v1002 = vld [vmem:[#allocation5] sm:$0xff]
      %v1003 = vld [vmem:[%s870] sm:$0xff]
      %v1004 = vrcp.pop %v1003
      %1006 = vset.pattern.permute.xlu0 0
      %1007 = vperm.xlu0 %1006, %v1004
      %v1008 = vpop.permute.xlu0 %1007
      %v1010 = vmul.f32 %v1002, %v1008
      %1011 = vst.msk [vmem:[#allocation5] sm:$0xff] %vm967, %v1010
      %v1012 = vld [vmem:[#allocation5] sm:$0xff]
      %vm1013 = vcmask 261120
      %1014 = vst.msk [vmem:[#allocation6] sm:$0xff] %vm1013, %v1012
    $region21: #{tpu_custom_call.1} parent=1 // pred_fallthru
      _
    // Predicated region
    $region22: #{tpu_custom_call.1} parent=1 // pred_check
      _
    $region23: #{tpu_custom_call.1} parent=1 // pred_check_branch
      %1016 = sbr.rel (0) target = $region25
    $region24: #{tpu_custom_call.1} parent=1 // pred_region
      %s1018 = ssub.s32 128, 128
      %1019 = vsyncadd [#allocation7], %s1018
      %s1021 = sshll.u32 [#allocation6], 4
      %s1022 = int_to_ptr.vmem [resolvable:$true] %s1021
      %1024 = dma.vmem_to_hbm [thread:$0]  %s1022, 128, %s3, [#allocation7]
    $region25: #{tpu_custom_call.1} parent=1 // pred_fallthru
      _
    // Predicated region
    $region26: #{tpu_custom_call.1} parent=1 // pred_check
      _
    $region27: #{tpu_custom_call.1} parent=1 // pred_check_branch
      %1026 = sbr.rel (0) target = $region29
    $region28: #{tpu_custom_call.1} parent=1 // pred_region
      %1027 = dma.done [#allocation7], 128
    $region29: #{tpu_custom_call.1} parent=1 // pred_fallthru
      _
    %1028 = vsyncpa [#allocation7], 1

</llo_original>
